<compile_context>
chip_gen: v5e
topology: v5e:2x2
jax: 0.10.0
libtpu: 0.0.40
codegen_flags: <defaults>
</compile_context>

<pallas_src>
import functools
import math

import jax
import jax.numpy as jnp
from jax.experimental import pallas as pl
from jax.experimental.pallas import tpu as pltpu

_LOG_2PI = math.log(2.0 * math.pi)
_LN_EPS = 1e-5

# Tanh-approx GELU runs on the EUP (separate VLIW slot); it deviates from torch's exact
# erf-based F.gelu by ~1e-3 in the tails.  Set True for closer bit-parity with PyTorch.
_EXACT_GELU = False


def _round_up(n, m):
    return ((n + m - 1) // m) * m


# ---------------------------------------------------------------------------
# Math helpers (usable both inside Pallas kernels and in plain JAX)
# ---------------------------------------------------------------------------
def _erf(x):
    # Abramowitz & Stegun 7.1.26 polynomial (max abs err ~1.5e-7): exact-GELU parity path.
    a1, a2, a3, a4, a5 = 0.254829592, -0.284496736, 1.421413741, -1.453152027, 1.061405429
    p = 0.3275911
    ax = jnp.abs(x)
    t = 1.0 / (1.0 + p * ax)
    poly = ((((a5 * t + a4) * t + a3) * t + a2) * t + a1) * t
    y = 1.0 - poly * jnp.exp(-ax * ax)
    return jnp.where(x >= 0, y, -y)


def _gelu(x, exact):
    if exact:
        return 0.5 * x * (1.0 + _erf(x * 0.7071067811865476))
    c = 0.7978845608028654  # sqrt(2/pi)
    return 0.5 * x * (1.0 + jnp.tanh(c * (x + 0.044715 * x * x * x)))


def _layer_norm_channels(y, gamma, beta, eps):
    # modules.LayerNorm: normalize over channels (axis 0 of (C, T)) per timestep.
    # Single pass: E[y] and E[y^2] computed together (one pair of cross-sublane reductions).
    inv_c = 1.0 / y.shape[0]
    m1 = jnp.sum(y, axis=0, keepdims=True) * inv_c
    m2 = jnp.sum(y * y, axis=0, keepdims=True) * inv_c
    var = m2 - m1 * m1
    return (y - m1) * jax.lax.rsqrt(var + eps) * gamma + beta


# ---------------------------------------------------------------------------
# Fused Pallas kernel: pre 1x1 -> n_layers DDSConv layers -> proj 1x1 (per batch element)
# ---------------------------------------------------------------------------
def _fused_stack_kernel(*refs, K, n_layers, eps, halo, cin_one, has_g, exact_gelu):
    if has_g:
        (x_ref, m_ref, g_ref, wpre_ref, bpre_ref, small_ref, w11_ref,
         wproj_ref, bproj_ref, o_ref, pad_ref) = refs
    else:
        (x_ref, m_ref, wpre_ref, bpre_ref, small_ref, w11_ref,
         wproj_ref, bproj_ref, o_ref, pad_ref) = refs

    mask = m_ref[0]                                   # (1, Tp)
    C = wpre_ref.shape[0]
    Tp = mask.shape[-1]
    center = (K - 1) // 2

    # ---- pre 1x1 conv (+ optional conditioning) ---------------------------------------
    if cin_one:
        # A length-1 contraction would waste the MXU; do a VPU broadcast multiply instead.
        h = wpre_ref[...] * jnp.broadcast_to(x_ref[0], (C, Tp)) + bpre_ref[...]
    else:
        # NOTE: default matmul precision (bf16-pass MXU) accepted deliberately; ~1e-3 rel
        # deviation from PyTorch f32 Conv1d.
        h = jnp.dot(wpre_ref[...], x_ref[0],
                    preferred_element_type=jnp.float32) + bpre_ref[...]
    if has_g:
        h = h + g_ref[0]

    # Zero the halos of the VMEM pad buffer once; the middle is rewritten every layer, so
    # the zero halos provide the conv zero-padding for every dilation.
    zero_halo = jnp.zeros((C, halo), jnp.float32)
    pad_ref[:, :halo] = zero_halo
    pad_ref[:, halo + Tp:2 * halo + Tp] = zero_halo

    # ---- fused DDSConv layers ----------------------------------------------------------
    for l in range(n_layers):
        dil = K ** l
        sp = small_ref[l]                             # (C, K+6) packed small params
        b_sep = sp[:, K:K + 1]
        g1, be1 = sp[:, K + 1:K + 2], sp[:, K + 2:K + 3]
        b11 = sp[:, K + 3:K + 4]
        g2, be2 = sp[:, K + 4:K + 5], sp[:, K + 5:K + 6]

        pad_ref[:, halo:halo + Tp] = h * mask         # masked input; halos already zero
        xp = pad_ref[...]                             # (C, Tp + 2*halo), VMEM resident

        y = jnp.zeros((C, Tp), jnp.float32) + b_sep
        for k in range(K):                            # depthwise dilated conv (static unroll)
            off = halo + (k - center) * dil
            y = y + sp[:, k:k + 1] * xp[:, off:off + Tp]
        y = _layer_norm_channels(y, g1, be1, eps)
        y = _gelu(y, exact_gelu)
        y = jnp.dot(w11_ref[l], y, preferred_element_type=jnp.float32) + b11
        y = _layer_norm_channels(y, g2, be2, eps)
        y = _gelu(y, exact_gelu)
        h = h + y                                     # dropout == identity (eval-mode kernel)

    # ---- proj 1x1 conv + mask ----------------------------------------------------------
    h = h * mask
    o = jnp.dot(wproj_ref[...], h, preferred_element_type=jnp.float32) + bproj_ref[...]
    o_ref[0] = o * mask


def fused_conv_stack(x, x_mask, g, pre_p, dds_p, proj_p, kernel_size,
                     *, eps=_LN_EPS, exact_gelu=_EXACT_GELU):
    """pre(1x1) -> DDSConv(n_layers, g) -> proj(1x1) * mask, as ONE pallas_call."""
    B, Cin, Tp = x.shape
    assert Tp % 128 == 0, "time axis must be padded to a lane-dense multiple of 128"
    C = pre_p['w'].shape[0]
    Cout = proj_p['w'].shape[0]
    n_layers = dds_p['w11'].shape[0]
    K = kernel_size
    assert dds_p['small'].shape[2] == K + 6
    has_g = g is not None
    cin_one = (Cin == 1)

    maxpad = (K ** (n_layers - 1)) * (K - 1) // 2
    halo = max(128, _round_up(maxpad, 128))

    kern = functools.partial(_fused_stack_kernel, K=K, n_layers=n_layers, eps=eps,
                             halo=halo, cin_one=cin_one, has_g=has_g,
                             exact_gelu=exact_gelu)

    inputs = [x, x_mask]
    in_specs = [pl.BlockSpec((1, Cin, Tp), lambda i: (i, 0, 0)),
                pl.BlockSpec((1, 1, Tp), lambda i: (i, 0, 0))]
    if has_g:
        inputs.append(g)
        in_specs.append(pl.BlockSpec((1, C, Tp), lambda i: (i, 0, 0)))
    inputs += [pre_p['w'], pre_p['b'].reshape(C, 1),
               dds_p['small'], dds_p['w11'],
               proj_p['w'], proj_p['b'].reshape(Cout, 1)]
    in_specs += [pl.BlockSpec((C, Cin), lambda i: (0, 0)),
                 pl.BlockSpec((C, 1), lambda i: (0, 0)),
                 pl.BlockSpec((n_layers, C, K + 6), lambda i: (0, 0, 0)),
                 pl.BlockSpec((n_layers, C, C), lambda i: (0, 0, 0)),
                 pl.BlockSpec((Cout, C), lambda i: (0, 0)),
                 pl.BlockSpec((Cout, 1), lambda i: (0, 0))]

    # Advisory cost estimate + explicit scoped-VMEM sizing.
    flops = 2 * B * Tp * (C * Cin + n_layers * (C * C + C * K) + Cout * C)
    transcendentals = 4 * B * Tp * C * n_layers
    bytes_accessed = int(sum(4 * v.size for v in inputs) + 4 * B * Cout * Tp)

    block_bytes = 4 * (Cin * Tp + Tp + (C * Tp if has_g else 0) + C * Cin + C
                       + n_layers * C * (K + 6) + n_layers * C * C
                       + Cout * C + Cout + Cout * Tp)
    scratch_bytes = 4 * C * (Tp + 2 * halo)
    vmem_need = 2 * block_bytes + scratch_bytes + 8 * 4 * C * Tp
    vmem_limit = int(min(max(2 * vmem_need, 32 << 20), 64 << 20))

    return pl.pallas_call(
        kern,
        out_shape=jax.ShapeDtypeStruct((B, Cout, Tp), x.dtype),
        grid=(B,),
        in_specs=in_specs,
        out_specs=pl.BlockSpec((1, Cout, Tp), lambda i: (i, 0, 0)),
        scratch_shapes=[pltpu.VMEM((C, Tp + 2 * halo), jnp.float32)],
        compiler_params=pltpu.CompilerParams(
            dimension_semantics=("parallel",),
            vmem_limit_bytes=vmem_limit),
        cost_estimate=pl.CostEstimate(flops=int(flops),
                                      transcendentals=int(transcendentals),
                                      bytes_accessed=bytes_accessed),
    )(*inputs)


# ---------------------------------------------------------------------------
# Plain-JAX reference of the fused stack (used only for the in-script self-check)
# ---------------------------------------------------------------------------
def _ref_conv_stack(x, x_mask, g, pre_p, dds_p, proj_p, K,
                    eps=_LN_EPS, exact_gelu=_EXACT_GELU):
    hi = jax.lax.Precision.HIGHEST

    def conv1x1(v, w, b):
        return jnp.einsum('oc,bct->bot', w, v, precision=hi) + b[None, :, None]

    h = conv1x1(x, pre_p['w'], pre_p['b'])
    if g is not None:
        h = h + g
    Tp = x.shape[-1]
    center = (K - 1) // 2
    n_layers = dds_p['w11'].shape[0]
    for l in range(n_layers):
        dil = K ** l
        sp = dds_p['small'][l]
        pad = dil * (K - 1) // 2
        hm = h * x_mask
        hp = jnp.pad(hm, ((0, 0), (0, 0), (pad, pad)))
        y = sp[:, K][None, :, None] * jnp.ones_like(h)
        for k in range(K):
            y = y + sp[:, k][None, :, None] * hp[:, :, k * dil:k * dil + Tp]

        def ln(v, gm, bt):
            m = jnp.mean(v, axis=1, keepdims=True)
            var = jnp.mean((v - m) ** 2, axis=1, keepdims=True)
            return (v - m) * jax.lax.rsqrt(var + eps) * gm[None, :, None] + bt[None, :, None]

        y = _gelu(ln(y, sp[:, K + 1], sp[:, K + 2]), exact_gelu)
        y = jnp.einsum('oc,bct->bot', dds_p['w11'][l], y, precision=hi) + sp[:, K + 3][None, :, None]
        y = _gelu(ln(y, sp[:, K + 4], sp[:, K + 5]), exact_gelu)
        h = h + y
    h = h * x_mask
    return conv1x1(h, proj_p['w'], proj_p['b']) * x_mask


# ---------------------------------------------------------------------------
# Flow components (plain JAX glue around the Pallas conv kernels)
# ---------------------------------------------------------------------------
def _rational_quadratic_spline(inputs, uw, uh, ud, inverse, left, right, bottom, top,
                               min_bin_width, min_bin_height, min_derivative,
                               need_logdet=True):
    num_bins = uw.shape[-1]
    widths = jax.nn.softmax(uw, axis=-1)
    widths = min_bin_width + (1 - min_bin_width * num_bins) * widths
    cumwidths = jnp.cumsum(widths, axis=-1)
    cumwidths = jnp.concatenate([jnp.zeros_like(cumwidths[..., :1]), cumwidths], axis=-1)
    cumwidths = (right - left) * cumwidths + left
    cumwidths = cumwidths.at[..., 0].set(left)
    cumwidths = cumwidths.at[..., -1].set(right)
    widths = cumwidths[..., 1:] - cumwidths[..., :-1]

    derivatives = min_derivative + jax.nn.softplus(ud)

    heights = jax.nn.softmax(uh, axis=-1)
    heights = min_bin_height + (1 - min_bin_height * num_bins) * heights
    cumheights = jnp.cumsum(heights, axis=-1)
    cumheights = jnp.concatenate([jnp.zeros_like(cumheights[..., :1]), cumheights], axis=-1)
    cumheights = (top - bottom) * cumheights + bottom
    cumheights = cumheights.at[..., 0].set(bottom)
    cumheights = cumheights.at[..., -1].set(top)
    heights = cumheights[..., 1:] - cumheights[..., :-1]

    locs = cumheights if inverse else cumwidths
    locs = locs.at[..., -1].add(1e-6)
    bin_idx = jnp.sum((inputs[..., None] >= locs).astype(jnp.int32), axis=-1) - 1
    bin_idx = jnp.clip(bin_idx, 0, num_bins - 1)[..., None]

    g = lambda a: jnp.take_along_axis(a, bin_idx, axis=-1)[..., 0]
    in_cumw = g(cumwidths)
    in_binw = g(widths)
    in_cumh = g(cumheights)
    delta = heights / widths
    in_delta = g(delta)
    in_d = g(derivatives)
    in_d1 = g(derivatives[..., 1:])
    in_h = g(heights)

    if inverse:
        a = ((inputs - in_cumh) * (in_d + in_d1 - 2 * in_delta) + in_h * (in_delta - in_d))
        b = (in_h * in_d - (inputs - in_cumh) * (in_d + in_d1 - 2 * in_delta))
        c = -in_delta * (inputs - in_cumh)
        disc = jnp.maximum(b ** 2 - 4 * a * c, 0.0)   # clamp fp-rounding negatives
        root = (2 * c) / (-b - jnp.sqrt(disc))
        outputs = root * in_binw + in_cumw
        if not need_logdet:
            return outputs, None
        s = root * (1 - root)
        denom = in_delta + (in_d + in_d1 - 2 * in_delta) * s
        dnum = in_delta ** 2 * (in_d1 * root ** 2 + 2 * in_delta * s + in_d * (1 - root) ** 2)
        logabsdet = jnp.log(dnum) - 2 * jnp.log(denom)
        return outputs, -logabsdet
    else:
        theta = (inputs - in_cumw) / in_binw
        s = theta * (1 - theta)
        numerator = in_h * (in_delta * theta ** 2 + in_d * s)
        denom = in_delta + (in_d + in_d1 - 2 * in_delta) * s
        outputs = in_cumh + numerator / denom
        if not need_logdet:
            return outputs, None
        dnum = in_delta ** 2 * (in_d1 * theta ** 2 + 2 * in_delta * s + in_d * (1 - theta) ** 2)
        logabsdet = jnp.log(dnum) - 2 * jnp.log(denom)
        return outputs, logabsdet


def piecewise_rational_quadratic_transform(inputs, uw, uh, ud, inverse, tail_bound,
                                           min_bin_width=1e-3, min_bin_height=1e-3,
                                           min_derivative=1e-3, need_logdet=True):
    # TODO(synk): spline bin-search/gather is tiny elementwise work kept in plain JAX; the
    # conv/matmul hot path that produces its parameters runs in the fused Pallas kernel.
    inside = (inputs >= -tail_bound) & (inputs <= tail_bound)
    constant = math.log(math.exp(1.0 - min_derivative) - 1.0)
    ud = jnp.pad(ud, [(0, 0)] * (ud.ndim - 1) + [(1, 1)], constant_values=constant)
    clipped = jnp.clip(inputs, -tail_bound, tail_bound)
    out_s, lad_s = _rational_quadratic_spline(
        clipped, uw, uh, ud, inverse,
        left=-tail_bound, right=tail_bound, bottom=-tail_bound, top=tail_bound,
        min_bin_width=min_bin_width, min_bin_height=min_bin_height,
        min_derivative=min_derivative, need_logdet=need_logdet)
    outputs = jnp.where(inside, out_s, inputs)
    if not need_logdet:
        return outputs, None
    logabsdet = jnp.where(inside, lad_s, jnp.zeros_like(inputs))
    return outputs, logabsdet


def elementwise_affine(p, x, x_mask, reverse):
    if not reverse:
        y = (p['m'] + jnp.exp(p['logs']) * x) * x_mask
        logdet = jnp.sum(p['logs'] * x_mask, axis=(1, 2))
        return y, logdet
    return (x - p['m']) * jnp.exp(-p['logs']) * x_mask


def log_flow(x, x_mask, reverse=False):
    if not reverse:
        y = jnp.log(jnp.maximum(x, 1e-5)) * x_mask
        logdet = jnp.sum(-y, axis=(1, 2))
        return y, logdet
    return jnp.exp(x) * x_mask


def flip_flow(x, reverse):
    y = jnp.flip(x, axis=1)
    if not reverse:
        return y, jnp.zeros((x.shape[0],), x.dtype)
    return y


def conv_flow(p, x, x_mask, g, kernel_size, reverse, tail_bound=5.0):
    half = 1
    x0, x1 = x[:, :half], x[:, half:]
    filt = p['pre']['w'].shape[0]
    num_bins = (p['proj']['w'].shape[0] // half + 1) // 3
    h = fused_conv_stack(x0, x_mask, g, p['pre'], p['convs'], p['proj'], kernel_size)
    B, c, Tp = x0.shape
    h = h.reshape(B, c, -1, Tp).transpose(0, 1, 3, 2)          # (B, 1, Tp, 3*num_bins - 1)
    uw = h[..., :num_bins] / math.sqrt(filt)
    uh = h[..., num_bins:2 * num_bins] / math.sqrt(filt)
    ud = h[..., 2 * num_bins:]
    x1_new, logabsdet = piecewise_rational_quadratic_transform(
        x1, uw, uh, ud, inverse=reverse, tail_bound=tail_bound, need_logdet=not reverse)
    x = jnp.concatenate([x0, x1_new], axis=1) * x_mask
    if reverse:
        return x
    logdet = jnp.sum(logabsdet * x_mask, axis=(1, 2))
    return x, logdet


# ---------------------------------------------------------------------------
# StochasticDurationPredictor forward
# ---------------------------------------------------------------------------
@functools.partial(jax.jit, static_argnames=("reverse", "kernel_size"))
def sdp_forward(params, x, x_mask, w, rng, *, reverse=False, noise_scale=1.0, kernel_size=3):
    B, Cin, T = x.shape
    Tp = _round_up(T, 128)                       # lane-dense time axis for all Pallas blocks
    pad = ((0, 0), (0, 0), (0, Tp - T))
    x = jnp.pad(x, pad)
    x_mask = jnp.pad(x_mask, pad)

    # TODO(synk): gin_channels conditioning (self.cond) not exercised (gin_channels == 0).
    x = fused_conv_stack(x, x_mask, None, params['pre'], params['convs'],
                         params['proj'], kernel_size)          # already * x_mask in-kernel

    if not reverse:
        assert w is not None
        w = jnp.pad(w, pad)
        h_w = fused_conv_stack(w, x_mask, None, params['post_pre'], params['post_convs'],
                               params['post_proj'], kernel_size)
        e_q = jax.random.normal(rng, (B, 2, Tp), dtype=x.dtype) * x_mask
        z_q = e_q
        gq = x + h_w
        logdet_tot_q = 0.0
        z_q, ld = elementwise_affine(params['post_flows'][0], z_q, x_mask, False)
        logdet_tot_q = logdet_tot_q + ld
        for i in range(4):
            z_q, ld = conv_flow(params['post_flows'][i + 1], z_q, x_mask, gq, kernel_size, False)
            logdet_tot_q = logdet_tot_q + ld
            z_q, ld = flip_flow(z_q, False)
            logdet_tot_q = logdet_tot_q + ld
        z_u, z1 = z_q[:, :1], z_q[:, 1:2]
        u = jax.nn.sigmoid(z_u) * x_mask
        z0 = (w - u) * x_mask
        logdet_tot_q = logdet_tot_q + jnp.sum(
            (jax.nn.log_sigmoid(z_u) + jax.nn.log_sigmoid(-z_u)) * x_mask, axis=(1, 2))
        logq = jnp.sum(-0.5 * (_LOG_2PI + e_q ** 2) * x_mask, axis=(1, 2)) - logdet_tot_q

        logdet_tot = 0.0
        z0, ld = log_flow(z0, x_mask, False)
        logdet_tot = logdet_tot + ld
        z = jnp.concatenate([z0, z1], axis=1)
        z, ld = elementwise_affine(params['flows'][0], z, x_mask, False)
        logdet_tot = logdet_tot + ld
        for i in range(4):
            z, ld = conv_flow(params['flows'][i + 1], z, x_mask, x, kernel_size, False)
            logdet_tot = logdet_tot + ld
            z, ld = flip_flow(z, False)
            logdet_tot = logdet_tot + ld
        nll = jnp.sum(0.5 * (_LOG_2PI + z ** 2) * x_mask, axis=(1, 2)) - logdet_tot
        return nll + logq
    else:
        # reversed(flows)[:-2] + [last]  ==  [Flip, CF4, Flip, CF3, Flip, CF2, Flip, EA]
        z = jax.random.normal(rng, (B, 2, Tp), dtype=x.dtype) * noise_scale
        z = flip_flow(z, True)
        for i in (4, 3, 2):
            z = conv_flow(params['flows'][i], z, x_mask, x, kernel_size, True)
            z = flip_flow(z, True)
        z = elementwise_affine(params['flows'][0], z, x_mask, True)
        logw = z[:, :1, :T]
        return logw


# ---------------------------------------------------------------------------
# Deterministic parameter construction (shapes follow the PyTorch __init__)
# ---------------------------------------------------------------------------
def _init_conv1x1(key, cout, cin, scale=0.1):
    kw, kb = jax.random.split(key)
    return {'w': scale * jax.random.normal(kw, (cout, cin), jnp.float32),
            'b': scale * jax.random.normal(kb, (cout,), jnp.float32)}


def _init_dds_packed(key, channels, ksize, n_layers, scale=0.1):
    # packed small params per layer: [w_sep(K) | b_sep | g1 | be1 | b11 | g2 | be2] -> (C, K+6)
    smalls, w11s = [], []
    for _ in range(n_layers):
        key, k1, k2, k3, k4 = jax.random.split(key, 5)
        w_sep = scale * jax.random.normal(k1, (channels, ksize), jnp.float32)
        b_sep = scale * jax.random.normal(k2, (channels, 1), jnp.float32)
        g1 = jnp.ones((channels, 1), jnp.float32)
        be1 = jnp.zeros((channels, 1), jnp.float32)
        w11 = scale * jax.random.normal(k3, (channels, channels), jnp.float32)
        b11 = scale * jax.random.normal(k4, (channels, 1), jnp.float32)
        g2 = jnp.ones((channels, 1), jnp.float32)
        be2 = jnp.zeros((channels, 1), jnp.float32)
        smalls.append(jnp.concatenate([w_sep, b_sep, g1, be1, b11, g2, be2], axis=1))
        w11s.append(w11)
    return {'small': jnp.stack(smalls), 'w11': jnp.stack(w11s)}


def _init_convflow(key, filt, ksize, num_bins=10, scale=0.1):
    k1, k2, k3 = jax.random.split(key, 3)
    # (torch zero-inits proj; small values here so the spline path is exercised)
    return {'pre': _init_conv1x1(k1, filt, 1, scale),
            'convs': _init_dds_packed(k2, filt, ksize, 3, scale),
            'proj': _init_conv1x1(k3, 1 * (num_bins * 3 - 1), filt, scale * 0.1)}


def _init_ea(key):
    k1, k2 = jax.random.split(key)
    return {'m': 0.1 * jax.random.normal(k1, (2, 1), jnp.float32),
            'logs': 0.1 * jax.random.normal(k2, (2, 1), jnp.float32)}


def init_sdp(key, in_channels, kernel_size, n_flows=4, gin_channels=0):
    filt = in_channels  # filter_channels = in_channels (as in __init__)
    keys = jax.random.split(key, 11)
    params = {
        'pre': _init_conv1x1(keys[0], filt, in_channels),
        'proj': _init_conv1x1(keys[1], filt, filt),
        'convs': _init_dds_packed(keys[2], filt, kernel_size, 3),
        'post_pre': _init_conv1x1(keys[3], filt, 1),
        'post_proj': _init_conv1x1(keys[4], filt, filt),
        'post_convs': _init_dds_packed(keys[5], filt, kernel_size, 3),
        'flows': [_init_ea(keys[6])] + [_init_convflow(k, filt, kernel_size)
                                        for k in jax.random.split(keys[7], n_flows)],
        'post_flows': [_init_ea(keys[8])] + [_init_convflow(k, filt, kernel_size)
                                             for k in jax.random.split(keys[9], 4)],
    }
    if gin_channels != 0:
        params['cond'] = _init_conv1x1(keys[10], filt, gin_channels)
    return params


# ---------------------------------------------------------------------------
if __name__ == "__main__":
    key = jax.random.PRNGKey(0)
    kp, kx, kw, kq, kz, kg = jax.random.split(key, 6)

    B, Cin, T = 2, 8, 16
    KSIZE = 3

    params = init_sdp(kp, Cin, KSIZE, n_flows=4, gin_channels=0)

    x = jax.random.normal(kx, (B, Cin, T), jnp.float32)
    lengths = jnp.array([16, 12])
    x_mask = (jnp.arange(T)[None, :] < lengths[:, None]).astype(jnp.float32)[:, None, :]
    w = jnp.abs(jax.random.normal(kw, (B, 1, T), jnp.float32)) * x_mask  # durations

    # ---- self-check: fused Pallas conv stack vs plain-JAX reference --------------------
    Tp = _round_up(T, 128)
    pad3 = ((0, 0), (0, 0), (0, Tp - T))
    xp_, mp_ = jnp.pad(x, pad3), jnp.pad(x_mask, pad3)

    got = fused_conv_stack(xp_, mp_, None, params['pre'], params['convs'],
                           params['proj'], KSIZE)
    want = _ref_conv_stack(xp_, mp_, None, params['pre'], params['convs'],
                           params['proj'], KSIZE)
    err_main = float(jnp.max(jnp.abs(got - want)))
    assert err_main < 5e-2, f"fused main conv stack mismatch: {err_main}"

    cf = params['flows'][1]
    gcond = jax.random.normal(kg, (B, Cin, Tp), jnp.float32)   # filter_channels == Cin
    x0p = jnp.pad(w, pad3)
    got = fused_conv_stack(x0p, mp_, gcond, cf['pre'], cf['convs'], cf['proj'], KSIZE)
    want = _ref_conv_stack(x0p, mp_, gcond, cf['pre'], cf['convs'], cf['proj'], KSIZE)
    err_cf = float(jnp.max(jnp.abs(got - want)))
    assert err_cf < 5e-2, f"fused conv-flow stack mismatch: {err_cf}"

    # ---- training branch (reverse=False): per-utterance nll + logq, shape (B,) ---------
    nll = sdp_forward(params, x, x_mask, w, kq, reverse=False, kernel_size=KSIZE)
    nll = jax.block_until_ready(nll)

    # ---- inference branch (reverse=True): logw, shape (B, 1, T) -------------------------
    logw = sdp_forward(params, x, x_mask, None, kz, reverse=True, noise_scale=1.0,
                       kernel_size=KSIZE)
    logw = jax.block_until_ready(logw)

    assert nll.shape == (B,)
    assert logw.shape == (B, 1, T)
    assert bool(jnp.all(jnp.isfinite(nll)))
    assert bool(jnp.all(jnp.isfinite(logw)))
    print("KERNEL_OK")
</pallas_src>

<mosaic_0001>
module attributes {stable_mosaic.version = 11 : i64} {
  func.func @_fused_stack_kernel(%arg0: i32, %arg1: memref<1x8x128xf32, #tpu.memory_space<vmem>>, %arg2: memref<1x1x128xf32, #tpu.memory_space<vmem>>, %arg3: memref<8x8xf32, #tpu.memory_space<vmem>>, %arg4: memref<8x1xf32, #tpu.memory_space<vmem>>, %arg5: memref<3x8x9xf32, #tpu.memory_space<vmem>>, %arg6: memref<3x8x8xf32, #tpu.memory_space<vmem>>, %arg7: memref<8x8xf32, #tpu.memory_space<vmem>>, %arg8: memref<8x1xf32, #tpu.memory_space<vmem>>, %arg9: memref<1x8x128xf32, #tpu.memory_space<vmem>>, %arg10: memref<8x384xf32, #tpu.memory_space<vmem>>) attributes {dimension_semantics = [#tpu.dimension_semantics<parallel>], iteration_bounds = array<i64: 2>, scalar_prefetch = 0 : i64, scratch_operands = 1 : i64, tpu.core_type = #tpu.core_type<tc>, window_params = [{transform_indices = @transform_0, window_bounds = array<i64: 1, 8, 128>}, {transform_indices = @transform_1, window_bounds = array<i64: 1, 1, 128>}, {pipeline_mode = #tpu.pipeline_mode<synchronous>, transform_indices = @transform_2, window_bounds = array<i64: 8, 8>}, {pipeline_mode = #tpu.pipeline_mode<synchronous>, transform_indices = @transform_3, window_bounds = array<i64: 8, 1>}, {pipeline_mode = #tpu.pipeline_mode<synchronous>, transform_indices = @transform_4, window_bounds = array<i64: 3, 8, 9>}, {pipeline_mode = #tpu.pipeline_mode<synchronous>, transform_indices = @transform_5, window_bounds = array<i64: 3, 8, 8>}, {pipeline_mode = #tpu.pipeline_mode<synchronous>, transform_indices = @transform_6, window_bounds = array<i64: 8, 8>}, {pipeline_mode = #tpu.pipeline_mode<synchronous>, transform_indices = @transform_7, window_bounds = array<i64: 8, 1>}, {transform_indices = @transform_8, window_bounds = array<i64: 1, 8, 128>}]} {
    %c0 = arith.constant 0 : index
    %c0_0 = arith.constant 0 : index
    %c0_1 = arith.constant 0 : index
    %0 = vector.load %arg2[%c0, %c0_0, %c0_1] : memref<1x1x128xf32, #tpu.memory_space<vmem>>, vector<1x1x128xf32>
    %1 = vector.shape_cast %0 : vector<1x1x128xf32> to vector<1x128xf32>
    %c0_2 = arith.constant 0 : index
    %c0_3 = arith.constant 0 : index
    %2 = vector.load %arg3[%c0_2, %c0_3] : memref<8x8xf32, #tpu.memory_space<vmem>>, vector<8x8xf32>
    %c0_4 = arith.constant 0 : index
    %c0_5 = arith.constant 0 : index
    %c0_6 = arith.constant 0 : index
    %3 = vector.load %arg1[%c0_4, %c0_5, %c0_6] : memref<1x8x128xf32, #tpu.memory_space<vmem>>, vector<1x8x128xf32>
    %4 = vector.shape_cast %3 : vector<1x8x128xf32> to vector<8x128xf32>
    %cst = arith.constant dense<0.000000e+00> : vector<8x128xf32>
    %5 = tpu.matmul %2, %4, %cst {dimension_numbers = #tpu.dot_dimension_numbers<[1], [0], [0], [1], [0, 0, 1, 1], [], []>} : vector<8x8xf32>, vector<8x128xf32>, vector<8x128xf32> -> vector<8x128xf32>
    %c0_7 = arith.constant 0 : index
    %c0_8 = arith.constant 0 : index
    %6 = vector.load %arg4[%c0_7, %c0_8] : memref<8x1xf32, #tpu.memory_space<vmem>>, vector<8x1xf32>
    %7 = vector.broadcast %6 : vector<8x1xf32> to vector<8x128xf32>
    %8 = arith.addf %5, %7 : vector<8x128xf32>
    %cst_9 = arith.constant 0.000000e+00 : f32
    %9 = vector.broadcast %cst_9 : f32 to vector<8x128xf32>
    %c0_10 = arith.constant 0 : index
    %c0_11 = arith.constant 0 : index
    %10 = vector.load %arg10[%c0_10, %c0_11] : memref<8x384xf32, #tpu.memory_space<vmem>>, vector<8x128xf32>
    tpu.vector_store %arg10[%c0_10, %c0_11], %9 {strides = array<i32>} : memref<8x384xf32, #tpu.memory_space<vmem>>, vector<8x128xf32>,
    %c0_12 = arith.constant 0 : index
    %c256 = arith.constant 256 : index
    %11 = vector.load %arg10[%c0_12, %c256] : memref<8x384xf32, #tpu.memory_space<vmem>>, vector<8x128xf32>
    tpu.vector_store %arg10[%c0_12, %c256], %9 {strides = array<i32>} : memref<8x384xf32, #tpu.memory_space<vmem>>, vector<8x128xf32>,
    %c0_13 = arith.constant 0 : index
    %c0_14 = arith.constant 0 : index
    %c0_15 = arith.constant 0 : index
    %12 = vector.load %arg5[%c0_13, %c0_14, %c0_15] : memref<3x8x9xf32, #tpu.memory_space<vmem>>, vector<1x8x9xf32>
    %13 = vector.shape_cast %12 : vector<1x8x9xf32> to vector<8x9xf32>
    %14 = vector.extract_strided_slice %13 {offsets = [0, 3], sizes = [8, 1], strides = [1, 1]} : vector<8x9xf32> to vector<8x1xf32>
    %15 = vector.extract_strided_slice %13 {offsets = [0, 4], sizes = [8, 1], strides = [1, 1]} : vector<8x9xf32> to vector<8x1xf32>
    %16 = vector.extract_strided_slice %13 {offsets = [0, 5], sizes = [8, 1], strides = [1, 1]} : vector<8x9xf32> to vector<8x1xf32>
    %17 = vector.extract_strided_slice %13 {offsets = [0, 6], sizes = [8, 1], strides = [1, 1]} : vector<8x9xf32> to vector<8x1xf32>
    %18 = vector.extract_strided_slice %13 {offsets = [0, 7], sizes = [8, 1], strides = [1, 1]} : vector<8x9xf32> to vector<8x1xf32>
    %19 = vector.extract_strided_slice %13 {offsets = [0, 8], sizes = [8, 1], strides = [1, 1]} : vector<8x9xf32> to vector<8x1xf32>
    %20 = vector.broadcast %1 : vector<1x128xf32> to vector<8x128xf32>
    %21 = arith.mulf %8, %20 : vector<8x128xf32>
    %c0_16 = arith.constant 0 : index
    %c128 = arith.constant 128 : index
    %22 = vector.load %arg10[%c0_16, %c128] : memref<8x384xf32, #tpu.memory_space<vmem>>, vector<8x128xf32>
    tpu.vector_store %arg10[%c0_16, %c128], %21 {strides = array<i32>} : memref<8x384xf32, #tpu.memory_space<vmem>>, vector<8x128xf32>,
    %c0_17 = arith.constant 0 : index
    %c0_18 = arith.constant 0 : index
    %23 = vector.load %arg10[%c0_17, %c0_18] : memref<8x384xf32, #tpu.memory_space<vmem>>, vector<8x384xf32>
    %cst_19 = arith.constant 0.000000e+00 : f32
    %24 = vector.broadcast %cst_19 : f32 to vector<8x128xf32>
    %25 = vector.broadcast %14 : vector<8x1xf32> to vector<8x128xf32>
    %26 = arith.addf %24, %25 : vector<8x128xf32>
    %27 = vector.extract_strided_slice %13 {offsets = [0, 0], sizes = [8, 1], strides = [1, 1]} : vector<8x9xf32> to vector<8x1xf32>
    %28 = vector.extract_strided_slice %23 {offsets = [0, 127], sizes = [8, 128], strides = [1, 1]} : vector<8x384xf32> to vector<8x128xf32>
    %29 = vector.broadcast %27 : vector<8x1xf32> to vector<8x128xf32>
    %30 = arith.mulf %29, %28 : vector<8x128xf32>
    %31 = arith.addf %26, %30 : vector<8x128xf32>
    %32 = vector.extract_strided_slice %13 {offsets = [0, 1], sizes = [8, 1], strides = [1, 1]} : vector<8x9xf32> to vector<8x1xf32>
    %33 = vector.extract_strided_slice %23 {offsets = [0, 128], sizes = [8, 128], strides = [1, 1]} : vector<8x384xf32> to vector<8x128xf32>
    %34 = vector.broadcast %32 : vector<8x1xf32> to vector<8x128xf32>
    %35 = arith.mulf %34, %33 : vector<8x128xf32>
    %36 = arith.addf %31, %35 : vector<8x128xf32>
    %37 = vector.extract_strided_slice %13 {offsets = [0, 2], sizes = [8, 1], strides = [1, 1]} : vector<8x9xf32> to vector<8x1xf32>
    %38 = vector.extract_strided_slice %23 {offsets = [0, 129], sizes = [8, 128], strides = [1, 1]} : vector<8x384xf32> to vector<8x128xf32>
    %39 = vector.broadcast %37 : vector<8x1xf32> to vector<8x128xf32>
    %40 = arith.mulf %39, %38 : vector<8x128xf32>
    %41 = arith.addf %36, %40 : vector<8x128xf32>
    %cst_20 = arith.constant dense<0.000000e+00> : vector<128xf32>
    %42 = vector.multi_reduction <add>, %41, %cst_20 [0] : vector<8x128xf32> to vector<128xf32>
    %43 = vector.shape_cast %42 : vector<128xf32> to vector<1x128xf32>
    %cst_21 = arith.constant 1.250000e-01 : f32
    %44 = vector.broadcast %cst_21 : f32 to vector<1x128xf32>
    %45 = arith.mulf %43, %44 : vector<1x128xf32>
    %46 = arith.mulf %41, %41 : vector<8x128xf32>
    %cst_22 = arith.constant dense<0.000000e+00> : vector<128xf32>
    %47 = vector.multi_reduction <add>, %46, %cst_22 [0] : vector<8x128xf32> to vector<128xf32>
    %48 = vector.shape_cast %47 : vector<128xf32> to vector<1x128xf32>
    %cst_23 = arith.constant 1.250000e-01 : f32
    %49 = vector.broadcast %cst_23 : f32 to vector<1x128xf32>
    %50 = arith.mulf %48, %49 : vector<1x128xf32>
    %51 = arith.mulf %45, %45 : vector<1x128xf32>
    %52 = arith.subf %50, %51 : vector<1x128xf32>
    %53 = vector.broadcast %45 : vector<1x128xf32> to vector<8x128xf32>
    %54 = arith.subf %41, %53 : vector<8x128xf32>
    %cst_24 = arith.constant 9.99999974E-6 : f32
    %55 = vector.broadcast %cst_24 : f32 to vector<1x128xf32>
    %56 = arith.addf %52, %55 : vector<1x128xf32>
    %57 = math.rsqrt %56 : vector<1x128xf32>
    %58 = vector.broadcast %57 : vector<1x128xf32> to vector<8x128xf32>
    %59 = arith.mulf %54, %58 : vector<8x128xf32>
    %60 = vector.broadcast %15 : vector<8x1xf32> to vector<8x128xf32>
    %61 = arith.mulf %59, %60 : vector<8x128xf32>
    %62 = vector.broadcast %16 : vector<8x1xf32> to vector<8x128xf32>
    %63 = arith.addf %61, %62 : vector<8x128xf32>
    %cst_25 = arith.constant 5.000000e-01 : f32
    %64 = vector.broadcast %cst_25 : f32 to vector<8x128xf32>
    %65 = arith.mulf %64, %63 : vector<8x128xf32>
    %cst_26 = arith.constant 4.471500e-02 : f32
    %66 = vector.broadcast %cst_26 : f32 to vector<8x128xf32>
    %67 = arith.mulf %66, %63 : vector<8x128xf32>
    %68 = arith.mulf %67, %63 : vector<8x128xf32>
    %69 = arith.mulf %68, %63 : vector<8x128xf32>
    %70 = arith.addf %63, %69 : vector<8x128xf32>
    %cst_27 = arith.constant 0.797884583 : f32
    %71 = vector.broadcast %cst_27 : f32 to vector<8x128xf32>
    %72 = arith.mulf %71, %70 : vector<8x128xf32>
    %73 = math.tanh %72 : vector<8x128xf32>
    %cst_28 = arith.constant 1.000000e+00 : f32
    %74 = vector.broadcast %cst_28 : f32 to vector<8x128xf32>
    %75 = arith.addf %74, %73 : vector<8x128xf32>
    %76 = arith.mulf %65, %75 : vector<8x128xf32>
    %c0_29 = arith.constant 0 : index
    %c0_30 = arith.constant 0 : index
    %c0_31 = arith.constant 0 : index
    %77 = vector.load %arg6[%c0_29, %c0_30, %c0_31] : memref<3x8x8xf32, #tpu.memory_space<vmem>>, vector<1x8x8xf32>
    %78 = vector.shape_cast %77 : vector<1x8x8xf32> to vector<8x8xf32>
    %cst_32 = arith.constant dense<0.000000e+00> : vector<8x128xf32>
    %79 = tpu.matmul %78, %76, %cst_32 {dimension_numbers = #tpu.dot_dimension_numbers<[1], [0], [0], [1], [0, 0, 1, 1], [], []>} : vector<8x8xf32>, vector<8x128xf32>, vector<8x128xf32> -> vector<8x128xf32>
    %80 = vector.broadcast %17 : vector<8x1xf32> to vector<8x128xf32>
    %81 = arith.addf %79, %80 : vector<8x128xf32>
    %cst_33 = arith.constant dense<0.000000e+00> : vector<128xf32>
    %82 = vector.multi_reduction <add>, %81, %cst_33 [0] : vector<8x128xf32> to vector<128xf32>
    %83 = vector.shape_cast %82 : vector<128xf32> to vector<1x128xf32>
    %cst_34 = arith.constant 1.250000e-01 : f32
    %84 = vector.broadcast %cst_34 : f32 to vector<1x128xf32>
    %85 = arith.mulf %83, %84 : vector<1x128xf32>
    %86 = arith.mulf %81, %81 : vector<8x128xf32>
    %cst_35 = arith.constant dense<0.000000e+00> : vector<128xf32>
    %87 = vector.multi_reduction <add>, %86, %cst_35 [0] : vector<8x128xf32> to vector<128xf32>
    %88 = vector.shape_cast %87 : vector<128xf32> to vector<1x128xf32>
    %cst_36 = arith.constant 1.250000e-01 : f32
    %89 = vector.broadcast %cst_36 : f32 to vector<1x128xf32>
    %90 = arith.mulf %88, %89 : vector<1x128xf32>
    %91 = arith.mulf %85, %85 : vector<1x128xf32>
    %92 = arith.subf %90, %91 : vector<1x128xf32>
    %93 = vector.broadcast %85 : vector<1x128xf32> to vector<8x128xf32>
    %94 = arith.subf %81, %93 : vector<8x128xf32>
    %cst_37 = arith.constant 9.99999974E-6 : f32
    %95 = vector.broadcast %cst_37 : f32 to vector<1x128xf32>
    %96 = arith.addf %92, %95 : vector<1x128xf32>
    %97 = math.rsqrt %96 : vector<1x128xf32>
    %98 = vector.broadcast %97 : vector<1x128xf32> to vector<8x128xf32>
    %99 = arith.mulf %94, %98 : vector<8x128xf32>
    %100 = vector.broadcast %18 : vector<8x1xf32> to vector<8x128xf32>
    %101 = arith.mulf %99, %100 : vector<8x128xf32>
    %102 = vector.broadcast %19 : vector<8x1xf32> to vector<8x128xf32>
    %103 = arith.addf %101, %102 : vector<8x128xf32>
    %cst_38 = arith.constant 5.000000e-01 : f32
    %104 = vector.broadcast %cst_38 : f32 to vector<8x128xf32>
    %105 = arith.mulf %104, %103 : vector<8x128xf32>
    %cst_39 = arith.constant 4.471500e-02 : f32
    %106 = vector.broadcast %cst_39 : f32 to vector<8x128xf32>
    %107 = arith.mulf %106, %103 : vector<8x128xf32>
    %108 = arith.mulf %107, %103 : vector<8x128xf32>
    %109 = arith.mulf %108, %103 : vector<8x128xf32>
    %110 = arith.addf %103, %109 : vector<8x128xf32>
    %cst_40 = arith.constant 0.797884583 : f32
    %111 = vector.broadcast %cst_40 : f32 to vector<8x128xf32>
    %112 = arith.mulf %111, %110 : vector<8x128xf32>
    %113 = math.tanh %112 : vector<8x128xf32>
    %cst_41 = arith.constant 1.000000e+00 : f32
    %114 = vector.broadcast %cst_41 : f32 to vector<8x128xf32>
    %115 = arith.addf %114, %113 : vector<8x128xf32>
    %116 = arith.mulf %105, %115 : vector<8x128xf32>
    %117 = arith.addf %8, %116 : vector<8x128xf32>
    %c1 = arith.constant 1 : index
    %c0_42 = arith.constant 0 : index
    %c0_43 = arith.constant 0 : index
    %118 = vector.load %arg5[%c1, %c0_42, %c0_43] : memref<3x8x9xf32, #tpu.memory_space<vmem>>, vector<1x8x9xf32>
    %119 = vector.shape_cast %118 : vector<1x8x9xf32> to vector<8x9xf32>
    %120 = vector.extract_strided_slice %119 {offsets = [0, 3], sizes = [8, 1], strides = [1, 1]} : vector<8x9xf32> to vector<8x1xf32>
    %121 = vector.extract_strided_slice %119 {offsets = [0, 4], sizes = [8, 1], strides = [1, 1]} : vector<8x9xf32> to vector<8x1xf32>
    %122 = vector.extract_strided_slice %119 {offsets = [0, 5], sizes = [8, 1], strides = [1, 1]} : vector<8x9xf32> to vector<8x1xf32>
    %123 = vector.extract_strided_slice %119 {offsets = [0, 6], sizes = [8, 1], strides = [1, 1]} : vector<8x9xf32> to vector<8x1xf32>
    %124 = vector.extract_strided_slice %119 {offsets = [0, 7], sizes = [8, 1], strides = [1, 1]} : vector<8x9xf32> to vector<8x1xf32>
    %125 = vector.extract_strided_slice %119 {offsets = [0, 8], sizes = [8, 1], strides = [1, 1]} : vector<8x9xf32> to vector<8x1xf32>
    %126 = vector.broadcast %1 : vector<1x128xf32> to vector<8x128xf32>
    %127 = arith.mulf %117, %126 : vector<8x128xf32>
    %c0_44 = arith.constant 0 : index
    %c128_45 = arith.constant 128 : index
    %128 = vector.load %arg10[%c0_44, %c128_45] : memref<8x384xf32, #tpu.memory_space<vmem>>, vector<8x128xf32>
    tpu.vector_store %arg10[%c0_44, %c128_45], %127 {strides = array<i32>} : memref<8x384xf32, #tpu.memory_space<vmem>>, vector<8x128xf32>,
    %c0_46 = arith.constant 0 : index
    %c0_47 = arith.constant 0 : index
    %129 = vector.load %arg10[%c0_46, %c0_47] : memref<8x384xf32, #tpu.memory_space<vmem>>, vector<8x384xf32>
    %cst_48 = arith.constant 0.000000e+00 : f32
    %130 = vector.broadcast %cst_48 : f32 to vector<8x128xf32>
    %131 = vector.broadcast %120 : vector<8x1xf32> to vector<8x128xf32>
    %132 = arith.addf %130, %131 : vector<8x128xf32>
    %133 = vector.extract_strided_slice %119 {offsets = [0, 0], sizes = [8, 1], strides = [1, 1]} : vector<8x9xf32> to vector<8x1xf32>
    %134 = vector.extract_strided_slice %129 {offsets = [0, 125], sizes = [8, 128], strides = [1, 1]} : vector<8x384xf32> to vector<8x128xf32>
    %135 = vector.broadcast %133 : vector<8x1xf32> to vector<8x128xf32>
    %136 = arith.mulf %135, %134 : vector<8x128xf32>
    %137 = arith.addf %132, %136 : vector<8x128xf32>
    %138 = vector.extract_strided_slice %119 {offsets = [0, 1], sizes = [8, 1], strides = [1, 1]} : vector<8x9xf32> to vector<8x1xf32>
    %139 = vector.extract_strided_slice %129 {offsets = [0, 128], sizes = [8, 128], strides = [1, 1]} : vector<8x384xf32> to vector<8x128xf32>
    %140 = vector.broadcast %138 : vector<8x1xf32> to vector<8x128xf32>
    %141 = arith.mulf %140, %139 : vector<8x128xf32>
    %142 = arith.addf %137, %141 : vector<8x128xf32>
    %143 = vector.extract_strided_slice %119 {offsets = [0, 2], sizes = [8, 1], strides = [1, 1]} : vector<8x9xf32> to vector<8x1xf32>
    %144 = vector.extract_strided_slice %129 {offsets = [0, 131], sizes = [8, 128], strides = [1, 1]} : vector<8x384xf32> to vector<8x128xf32>
    %145 = vector.broadcast %143 : vector<8x1xf32> to vector<8x128xf32>
    %146 = arith.mulf %145, %144 : vector<8x128xf32>
    %147 = arith.addf %142, %146 : vector<8x128xf32>
    %cst_49 = arith.constant dense<0.000000e+00> : vector<128xf32>
    %148 = vector.multi_reduction <add>, %147, %cst_49 [0] : vector<8x128xf32> to vector<128xf32>
    %149 = vector.shape_cast %148 : vector<128xf32> to vector<1x128xf32>
    %cst_50 = arith.constant 1.250000e-01 : f32
    %150 = vector.broadcast %cst_50 : f32 to vector<1x128xf32>
    %151 = arith.mulf %149, %150 : vector<1x128xf32>
    %152 = arith.mulf %147, %147 : vector<8x128xf32>
    %cst_51 = arith.constant dense<0.000000e+00> : vector<128xf32>
    %153 = vector.multi_reduction <add>, %152, %cst_51 [0] : vector<8x128xf32> to vector<128xf32>
    %154 = vector.shape_cast %153 : vector<128xf32> to vector<1x128xf32>
    %cst_52 = arith.constant 1.250000e-01 : f32
    %155 = vector.broadcast %cst_52 : f32 to vector<1x128xf32>
    %156 = arith.mulf %154, %155 : vector<1x128xf32>
    %157 = arith.mulf %151, %151 : vector<1x128xf32>
    %158 = arith.subf %156, %157 : vector<1x128xf32>
    %159 = vector.broadcast %151 : vector<1x128xf32> to vector<8x128xf32>
    %160 = arith.subf %147, %159 : vector<8x128xf32>
    %cst_53 = arith.constant 9.99999974E-6 : f32
    %161 = vector.broadcast %cst_53 : f32 to vector<1x128xf32>
    %162 = arith.addf %158, %161 : vector<1x128xf32>
    %163 = math.rsqrt %162 : vector<1x128xf32>
    %164 = vector.broadcast %163 : vector<1x128xf32> to vector<8x128xf32>
    %165 = arith.mulf %160, %164 : vector<8x128xf32>
    %166 = vector.broadcast %121 : vector<8x1xf32> to vector<8x128xf32>
    %167 = arith.mulf %165, %166 : vector<8x128xf32>
    %168 = vector.broadcast %122 : vector<8x1xf32> to vector<8x128xf32>
    %169 = arith.addf %167, %168 : vector<8x128xf32>
    %cst_54 = arith.constant 5.000000e-01 : f32
    %170 = vector.broadcast %cst_54 : f32 to vector<8x128xf32>
    %171 = arith.mulf %170, %169 : vector<8x128xf32>
    %cst_55 = arith.constant 4.471500e-02 : f32
    %172 = vector.broadcast %cst_55 : f32 to vector<8x128xf32>
    %173 = arith.mulf %172, %169 : vector<8x128xf32>
    %174 = arith.mulf %173, %169 : vector<8x128xf32>
    %175 = arith.mulf %174, %169 : vector<8x128xf32>
    %176 = arith.addf %169, %175 : vector<8x128xf32>
    %cst_56 = arith.constant 0.797884583 : f32
    %177 = vector.broadcast %cst_56 : f32 to vector<8x128xf32>
    %178 = arith.mulf %177, %176 : vector<8x128xf32>
    %179 = math.tanh %178 : vector<8x128xf32>
    %cst_57 = arith.constant 1.000000e+00 : f32
    %180 = vector.broadcast %cst_57 : f32 to vector<8x128xf32>
    %181 = arith.addf %180, %179 : vector<8x128xf32>
    %182 = arith.mulf %171, %181 : vector<8x128xf32>
    %c1_58 = arith.constant 1 : index
    %c0_59 = arith.constant 0 : index
    %c0_60 = arith.constant 0 : index
    %183 = vector.load %arg6[%c1_58, %c0_59, %c0_60] : memref<3x8x8xf32, #tpu.memory_space<vmem>>, vector<1x8x8xf32>
    %184 = vector.shape_cast %183 : vector<1x8x8xf32> to vector<8x8xf32>
    %cst_61 = arith.constant dense<0.000000e+00> : vector<8x128xf32>
    %185 = tpu.matmul %184, %182, %cst_61 {dimension_numbers = #tpu.dot_dimension_numbers<[1], [0], [0], [1], [0, 0, 1, 1], [], []>} : vector<8x8xf32>, vector<8x128xf32>, vector<8x128xf32> -> vector<8x128xf32>
    %186 = vector.broadcast %123 : vector<8x1xf32> to vector<8x128xf32>
    %187 = arith.addf %185, %186 : vector<8x128xf32>
    %cst_62 = arith.constant dense<0.000000e+00> : vector<128xf32>
    %188 = vector.multi_reduction <add>, %187, %cst_62 [0] : vector<8x128xf32> to vector<128xf32>
    %189 = vector.shape_cast %188 : vector<128xf32> to vector<1x128xf32>
    %cst_63 = arith.constant 1.250000e-01 : f32
    %190 = vector.broadcast %cst_63 : f32 to vector<1x128xf32>
    %191 = arith.mulf %189, %190 : vector<1x128xf32>
    %192 = arith.mulf %187, %187 : vector<8x128xf32>
    %cst_64 = arith.constant dense<0.000000e+00> : vector<128xf32>
    %193 = vector.multi_reduction <add>, %192, %cst_64 [0] : vector<8x128xf32> to vector<128xf32>
    %194 = vector.shape_cast %193 : vector<128xf32> to vector<1x128xf32>
    %cst_65 = arith.constant 1.250000e-01 : f32
    %195 = vector.broadcast %cst_65 : f32 to vector<1x128xf32>
    %196 = arith.mulf %194, %195 : vector<1x128xf32>
    %197 = arith.mulf %191, %191 : vector<1x128xf32>
    %198 = arith.subf %196, %197 : vector<1x128xf32>
    %199 = vector.broadcast %191 : vector<1x128xf32> to vector<8x128xf32>
    %200 = arith.subf %187, %199 : vector<8x128xf32>
    %cst_66 = arith.constant 9.99999974E-6 : f32
    %201 = vector.broadcast %cst_66 : f32 to vector<1x128xf32>
    %202 = arith.addf %198, %201 : vector<1x128xf32>
    %203 = math.rsqrt %202 : vector<1x128xf32>
    %204 = vector.broadcast %203 : vector<1x128xf32> to vector<8x128xf32>
    %205 = arith.mulf %200, %204 : vector<8x128xf32>
    %206 = vector.broadcast %124 : vector<8x1xf32> to vector<8x128xf32>
    %207 = arith.mulf %205, %206 : vector<8x128xf32>
    %208 = vector.broadcast %125 : vector<8x1xf32> to vector<8x128xf32>
    %209 = arith.addf %207, %208 : vector<8x128xf32>
    %cst_67 = arith.constant 5.000000e-01 : f32
    %210 = vector.broadcast %cst_67 : f32 to vector<8x128xf32>
    %211 = arith.mulf %210, %209 : vector<8x128xf32>
    %cst_68 = arith.constant 4.471500e-02 : f32
    %212 = vector.broadcast %cst_68 : f32 to vector<8x128xf32>
    %213 = arith.mulf %212, %209 : vector<8x128xf32>
    %214 = arith.mulf %213, %209 : vector<8x128xf32>
    %215 = arith.mulf %214, %209 : vector<8x128xf32>
    %216 = arith.addf %209, %215 : vector<8x128xf32>
    %cst_69 = arith.constant 0.797884583 : f32
    %217 = vector.broadcast %cst_69 : f32 to vector<8x128xf32>
    %218 = arith.mulf %217, %216 : vector<8x128xf32>
    %219 = math.tanh %218 : vector<8x128xf32>
    %cst_70 = arith.constant 1.000000e+00 : f32
    %220 = vector.broadcast %cst_70 : f32 to vector<8x128xf32>
    %221 = arith.addf %220, %219 : vector<8x128xf32>
    %222 = arith.mulf %211, %221 : vector<8x128xf32>
    %223 = arith.addf %117, %222 : vector<8x128xf32>
    %c2 = arith.constant 2 : index
    %c0_71 = arith.constant 0 : index
    %c0_72 = arith.constant 0 : index
    %224 = vector.load %arg5[%c2, %c0_71, %c0_72] : memref<3x8x9xf32, #tpu.memory_space<vmem>>, vector<1x8x9xf32>
    %225 = vector.shape_cast %224 : vector<1x8x9xf32> to vector<8x9xf32>
    %226 = vector.extract_strided_slice %225 {offsets = [0, 3], sizes = [8, 1], strides = [1, 1]} : vector<8x9xf32> to vector<8x1xf32>
    %227 = vector.extract_strided_slice %225 {offsets = [0, 4], sizes = [8, 1], strides = [1, 1]} : vector<8x9xf32> to vector<8x1xf32>
    %228 = vector.extract_strided_slice %225 {offsets = [0, 5], sizes = [8, 1], strides = [1, 1]} : vector<8x9xf32> to vector<8x1xf32>
    %229 = vector.extract_strided_slice %225 {offsets = [0, 6], sizes = [8, 1], strides = [1, 1]} : vector<8x9xf32> to vector<8x1xf32>
    %230 = vector.extract_strided_slice %225 {offsets = [0, 7], sizes = [8, 1], strides = [1, 1]} : vector<8x9xf32> to vector<8x1xf32>
    %231 = vector.extract_strided_slice %225 {offsets = [0, 8], sizes = [8, 1], strides = [1, 1]} : vector<8x9xf32> to vector<8x1xf32>
    %232 = vector.broadcast %1 : vector<1x128xf32> to vector<8x128xf32>
    %233 = arith.mulf %223, %232 : vector<8x128xf32>
    %c0_73 = arith.constant 0 : index
    %c128_74 = arith.constant 128 : index
    %234 = vector.load %arg10[%c0_73, %c128_74] : memref<8x384xf32, #tpu.memory_space<vmem>>, vector<8x128xf32>
    tpu.vector_store %arg10[%c0_73, %c128_74], %233 {strides = array<i32>} : memref<8x384xf32, #tpu.memory_space<vmem>>, vector<8x128xf32>,
    %c0_75 = arith.constant 0 : index
    %c0_76 = arith.constant 0 : index
    %235 = vector.load %arg10[%c0_75, %c0_76] : memref<8x384xf32, #tpu.memory_space<vmem>>, vector<8x384xf32>
    %cst_77 = arith.constant 0.000000e+00 : f32
    %236 = vector.broadcast %cst_77 : f32 to vector<8x128xf32>
    %237 = vector.broadcast %226 : vector<8x1xf32> to vector<8x128xf32>
    %238 = arith.addf %236, %237 : vector<8x128xf32>
    %239 = vector.extract_strided_slice %225 {offsets = [0, 0], sizes = [8, 1], strides = [1, 1]} : vector<8x9xf32> to vector<8x1xf32>
    %240 = vector.extract_strided_slice %235 {offsets = [0, 119], sizes = [8, 128], strides = [1, 1]} : vector<8x384xf32> to vector<8x128xf32>
    %241 = vector.broadcast %239 : vector<8x1xf32> to vector<8x128xf32>
    %242 = arith.mulf %241, %240 : vector<8x128xf32>
    %243 = arith.addf %238, %242 : vector<8x128xf32>
    %244 = vector.extract_strided_slice %225 {offsets = [0, 1], sizes = [8, 1], strides = [1, 1]} : vector<8x9xf32> to vector<8x1xf32>
    %245 = vector.extract_strided_slice %235 {offsets = [0, 128], sizes = [8, 128], strides = [1, 1]} : vector<8x384xf32> to vector<8x128xf32>
    %246 = vector.broadcast %244 : vector<8x1xf32> to vector<8x128xf32>
    %247 = arith.mulf %246, %245 : vector<8x128xf32>
    %248 = arith.addf %243, %247 : vector<8x128xf32>
    %249 = vector.extract_strided_slice %225 {offsets = [0, 2], sizes = [8, 1], strides = [1, 1]} : vector<8x9xf32> to vector<8x1xf32>
    %250 = vector.extract_strided_slice %235 {offsets = [0, 137], sizes = [8, 128], strides = [1, 1]} : vector<8x384xf32> to vector<8x128xf32>
    %251 = vector.broadcast %249 : vector<8x1xf32> to vector<8x128xf32>
    %252 = arith.mulf %251, %250 : vector<8x128xf32>
    %253 = arith.addf %248, %252 : vector<8x128xf32>
    %cst_78 = arith.constant dense<0.000000e+00> : vector<128xf32>
    %254 = vector.multi_reduction <add>, %253, %cst_78 [0] : vector<8x128xf32> to vector<128xf32>
    %255 = vector.shape_cast %254 : vector<128xf32> to vector<1x128xf32>
    %cst_79 = arith.constant 1.250000e-01 : f32
    %256 = vector.broadcast %cst_79 : f32 to vector<1x128xf32>
    %257 = arith.mulf %255, %256 : vector<1x128xf32>
    %258 = arith.mulf %253, %253 : vector<8x128xf32>
    %cst_80 = arith.constant dense<0.000000e+00> : vector<128xf32>
    %259 = vector.multi_reduction <add>, %258, %cst_80 [0] : vector<8x128xf32> to vector<128xf32>
    %260 = vector.shape_cast %259 : vector<128xf32> to vector<1x128xf32>
    %cst_81 = arith.constant 1.250000e-01 : f32
    %261 = vector.broadcast %cst_81 : f32 to vector<1x128xf32>
    %262 = arith.mulf %260, %261 : vector<1x128xf32>
    %263 = arith.mulf %257, %257 : vector<1x128xf32>
    %264 = arith.subf %262, %263 : vector<1x128xf32>
    %265 = vector.broadcast %257 : vector<1x128xf32> to vector<8x128xf32>
    %266 = arith.subf %253, %265 : vector<8x128xf32>
    %cst_82 = arith.constant 9.99999974E-6 : f32
    %267 = vector.broadcast %cst_82 : f32 to vector<1x128xf32>
    %268 = arith.addf %264, %267 : vector<1x128xf32>
    %269 = math.rsqrt %268 : vector<1x128xf32>
    %270 = vector.broadcast %269 : vector<1x128xf32> to vector<8x128xf32>
    %271 = arith.mulf %266, %270 : vector<8x128xf32>
    %272 = vector.broadcast %227 : vector<8x1xf32> to vector<8x128xf32>
    %273 = arith.mulf %271, %272 : vector<8x128xf32>
    %274 = vector.broadcast %228 : vector<8x1xf32> to vector<8x128xf32>
    %275 = arith.addf %273, %274 : vector<8x128xf32>
    %cst_83 = arith.constant 5.000000e-01 : f32
    %276 = vector.broadcast %cst_83 : f32 to vector<8x128xf32>
    %277 = arith.mulf %276, %275 : vector<8x128xf32>
    %cst_84 = arith.constant 4.471500e-02 : f32
    %278 = vector.broadcast %cst_84 : f32 to vector<8x128xf32>
    %279 = arith.mulf %278, %275 : vector<8x128xf32>
    %280 = arith.mulf %279, %275 : vector<8x128xf32>
    %281 = arith.mulf %280, %275 : vector<8x128xf32>
    %282 = arith.addf %275, %281 : vector<8x128xf32>
    %cst_85 = arith.constant 0.797884583 : f32
    %283 = vector.broadcast %cst_85 : f32 to vector<8x128xf32>
    %284 = arith.mulf %283, %282 : vector<8x128xf32>
    %285 = math.tanh %284 : vector<8x128xf32>
    %cst_86 = arith.constant 1.000000e+00 : f32
    %286 = vector.broadcast %cst_86 : f32 to vector<8x128xf32>
    %287 = arith.addf %286, %285 : vector<8x128xf32>
    %288 = arith.mulf %277, %287 : vector<8x128xf32>
    %c2_87 = arith.constant 2 : index
    %c0_88 = arith.constant 0 : index
    %c0_89 = arith.constant 0 : index
    %289 = vector.load %arg6[%c2_87, %c0_88, %c0_89] : memref<3x8x8xf32, #tpu.memory_space<vmem>>, vector<1x8x8xf32>
    %290 = vector.shape_cast %289 : vector<1x8x8xf32> to vector<8x8xf32>
    %cst_90 = arith.constant dense<0.000000e+00> : vector<8x128xf32>
    %291 = tpu.matmul %290, %288, %cst_90 {dimension_numbers = #tpu.dot_dimension_numbers<[1], [0], [0], [1], [0, 0, 1, 1], [], []>} : vector<8x8xf32>, vector<8x128xf32>, vector<8x128xf32> -> vector<8x128xf32>
    %292 = vector.broadcast %229 : vector<8x1xf32> to vector<8x128xf32>
    %293 = arith.addf %291, %292 : vector<8x128xf32>
    %cst_91 = arith.constant dense<0.000000e+00> : vector<128xf32>
    %294 = vector.multi_reduction <add>, %293, %cst_91 [0] : vector<8x128xf32> to vector<128xf32>
    %295 = vector.shape_cast %294 : vector<128xf32> to vector<1x128xf32>
    %cst_92 = arith.constant 1.250000e-01 : f32
    %296 = vector.broadcast %cst_92 : f32 to vector<1x128xf32>
    %297 = arith.mulf %295, %296 : vector<1x128xf32>
    %298 = arith.mulf %293, %293 : vector<8x128xf32>
    %cst_93 = arith.constant dense<0.000000e+00> : vector<128xf32>
    %299 = vector.multi_reduction <add>, %298, %cst_93 [0] : vector<8x128xf32> to vector<128xf32>
    %300 = vector.shape_cast %299 : vector<128xf32> to vector<1x128xf32>
    %cst_94 = arith.constant 1.250000e-01 : f32
    %301 = vector.broadcast %cst_94 : f32 to vector<1x128xf32>
    %302 = arith.mulf %300, %301 : vector<1x128xf32>
    %303 = arith.mulf %297, %297 : vector<1x128xf32>
    %304 = arith.subf %302, %303 : vector<1x128xf32>
    %305 = vector.broadcast %297 : vector<1x128xf32> to vector<8x128xf32>
    %306 = arith.subf %293, %305 : vector<8x128xf32>
    %cst_95 = arith.constant 9.99999974E-6 : f32
    %307 = vector.broadcast %cst_95 : f32 to vector<1x128xf32>
    %308 = arith.addf %304, %307 : vector<1x128xf32>
    %309 = math.rsqrt %308 : vector<1x128xf32>
    %310 = vector.broadcast %309 : vector<1x128xf32> to vector<8x128xf32>
    %311 = arith.mulf %306, %310 : vector<8x128xf32>
    %312 = vector.broadcast %230 : vector<8x1xf32> to vector<8x128xf32>
    %313 = arith.mulf %311, %312 : vector<8x128xf32>
    %314 = vector.broadcast %231 : vector<8x1xf32> to vector<8x128xf32>
    %315 = arith.addf %313, %314 : vector<8x128xf32>
    %cst_96 = arith.constant 5.000000e-01 : f32
    %316 = vector.broadcast %cst_96 : f32 to vector<8x128xf32>
    %317 = arith.mulf %316, %315 : vector<8x128xf32>
    %cst_97 = arith.constant 4.471500e-02 : f32
    %318 = vector.broadcast %cst_97 : f32 to vector<8x128xf32>
    %319 = arith.mulf %318, %315 : vector<8x128xf32>
    %320 = arith.mulf %319, %315 : vector<8x128xf32>
    %321 = arith.mulf %320, %315 : vector<8x128xf32>
    %322 = arith.addf %315, %321 : vector<8x128xf32>
    %cst_98 = arith.constant 0.797884583 : f32
    %323 = vector.broadcast %cst_98 : f32 to vector<8x128xf32>
    %324 = arith.mulf %323, %322 : vector<8x128xf32>
    %325 = math.tanh %324 : vector<8x128xf32>
    %cst_99 = arith.constant 1.000000e+00 : f32
    %326 = vector.broadcast %cst_99 : f32 to vector<8x128xf32>
    %327 = arith.addf %326, %325 : vector<8x128xf32>
    %328 = arith.mulf %317, %327 : vector<8x128xf32>
    %329 = arith.addf %223, %328 : vector<8x128xf32>
    %330 = vector.broadcast %1 : vector<1x128xf32> to vector<8x128xf32>
    %331 = arith.mulf %329, %330 : vector<8x128xf32>
    %c0_100 = arith.constant 0 : index
    %c0_101 = arith.constant 0 : index
    %332 = vector.load %arg7[%c0_100, %c0_101] : memref<8x8xf32, #tpu.memory_space<vmem>>, vector<8x8xf32>
    %cst_102 = arith.constant dense<0.000000e+00> : vector<8x128xf32>
    %333 = tpu.matmul %332, %331, %cst_102 {dimension_numbers = #tpu.dot_dimension_numbers<[1], [0], [0], [1], [0, 0, 1, 1], [], []>} : vector<8x8xf32>, vector<8x128xf32>, vector<8x128xf32> -> vector<8x128xf32>
    %c0_103 = arith.constant 0 : index
    %c0_104 = arith.constant 0 : index
    %334 = vector.load %arg8[%c0_103, %c0_104] : memref<8x1xf32, #tpu.memory_space<vmem>>, vector<8x1xf32>
    %335 = vector.broadcast %334 : vector<8x1xf32> to vector<8x128xf32>
    %336 = arith.addf %333, %335 : vector<8x128xf32>
    %337 = vector.broadcast %1 : vector<1x128xf32> to vector<8x128xf32>
    %338 = arith.mulf %336, %337 : vector<8x128xf32>
    %c0_105 = arith.constant 0 : index
    %c0_106 = arith.constant 0 : index
    %c0_107 = arith.constant 0 : index
    %339 = vector.load %arg9[%c0_105, %c0_106, %c0_107] : memref<1x8x128xf32, #tpu.memory_space<vmem>>, vector<1x8x128xf32>
    %340 = vector.shape_cast %339 : vector<1x8x128xf32> to vector<8x128xf32>
    %341 = vector.shape_cast %338 : vector<8x128xf32> to vector<1x8x128xf32>
    tpu.vector_store %arg9[%c0_105, %c0_106, %c0_107], %341 {strides = array<i32>} : memref<1x8x128xf32, #tpu.memory_space<vmem>>, vector<1x8x128xf32>,
    return
  }
  func.func @transform_0(%arg0: i32) -> (i32, i32, i32) {
    %c0_i32 = arith.constant 0 : i32
    %c0_i32_0 = arith.constant 0 : i32
    %c0_i32_1 = arith.constant 0 : i32
    return %arg0, %c0_i32, %c0_i32_0 : i32, i32, i32
  }
  func.func @transform_1(%arg0: i32) -> (i32, i32, i32) {
    %c0_i32 = arith.constant 0 : i32
    %c0_i32_0 = arith.constant 0 : i32
    %c0_i32_1 = arith.constant 0 : i32
    return %arg0, %c0_i32, %c0_i32_0 : i32, i32, i32
  }
  func.func @transform_2(%arg0: i32) -> (i32, i32) {
    %c0_i32 = arith.constant 0 : i32
    %c0_i32_0 = arith.constant 0 : i32
    %c0_i32_1 = arith.constant 0 : i32
    return %c0_i32, %c0_i32_0 : i32, i32
  }
  func.func @transform_3(%arg0: i32) -> (i32, i32) {
    %c0_i32 = arith.constant 0 : i32
    %c0_i32_0 = arith.constant 0 : i32
    %c0_i32_1 = arith.constant 0 : i32
    return %c0_i32, %c0_i32_0 : i32, i32
  }
  func.func @transform_4(%arg0: i32) -> (i32, i32, i32) {
    %c0_i32 = arith.constant 0 : i32
    %c0_i32_0 = arith.constant 0 : i32
    %c0_i32_1 = arith.constant 0 : i32
    %c0_i32_2 = arith.constant 0 : i32
    return %c0_i32, %c0_i32_0, %c0_i32_1 : i32, i32, i32
  }
  func.func @transform_5(%arg0: i32) -> (i32, i32, i32) {
    %c0_i32 = arith.constant 0 : i32
    %c0_i32_0 = arith.constant 0 : i32
    %c0_i32_1 = arith.constant 0 : i32
    %c0_i32_2 = arith.constant 0 : i32
    return %c0_i32, %c0_i32_0, %c0_i32_1 : i32, i32, i32
  }
  func.func @transform_6(%arg0: i32) -> (i32, i32) {
    %c0_i32 = arith.constant 0 : i32
    %c0_i32_0 = arith.constant 0 : i32
    %c0_i32_1 = arith.constant 0 : i32
    return %c0_i32, %c0_i32_0 : i32, i32
  }
  func.func @transform_7(%arg0: i32) -> (i32, i32) {
    %c0_i32 = arith.constant 0 : i32
    %c0_i32_0 = arith.constant 0 : i32
    %c0_i32_1 = arith.constant 0 : i32
    return %c0_i32, %c0_i32_0 : i32, i32
  }
  func.func @transform_8(%arg0: i32) -> (i32, i32, i32) {
    %c0_i32 = arith.constant 0 : i32
    %c0_i32_0 = arith.constant 0 : i32
    %c0_i32_1 = arith.constant 0 : i32
    return %arg0, %c0_i32, %c0_i32_0 : i32, i32, i32
  }
}

</mosaic_0001>

<llo_original>
// kernel: tpu_custom_call.1
$region0: #{tpu_custom_call.1}
  #allocation0 [shape = 'u32[]', space=smem, size = 0x4, offset = 0x4, fixed_abs, tag = 'smem constant byte address 0x4 - core index']
  #allocation1 [shape = 'u32[72,128]{1,0:T(1,128)}', space=vmem, size = 0x9000, scoped, tag = 'internal scratch']
  #allocation2 [shape = 'f32[8,384]{1,0:T(8,128)}', space=vmem, size = 0x3000, scoped, tag = 'scratch operand']
  %s0 = inlined_call_operand.vmem [shape: f32[2,8,128], index: 0, kind: input, shape index: {}]
  %s1 = inlined_call_operand.vmem [shape: f32[2,1,128], index: 1, kind: input, shape index: {}]
  %s2 = inlined_call_operand.hbm [shape: f32[8,8], index: 2, kind: input, shape index: {}]
  %s3 = inlined_call_operand.vmem [shape: f32[8,1], index: 3, kind: input, shape index: {}]
  %s4 = inlined_call_operand.hbm [shape: f32[3,8,9], index: 4, kind: input, shape index: {}]
  %s5 = inlined_call_operand.hbm [shape: f32[3,8,8], index: 5, kind: input, shape index: {}]
  %s6 = inlined_call_operand.hbm [shape: f32[8,8], index: 6, kind: input, shape index: {}]
  %s7 = inlined_call_operand.vmem [shape: f32[8,1], index: 7, kind: input, shape index: {}]
  %s8 = inlined_call_operand.hbm [shape: f32[2,8,128], index: 8, kind: output, shape index: {}]
  %s9 = sld [smem:[#allocation0]]
  $region81: #{tpu_custom_call.1} parent=0
    _
  %s11 = ssub.s32 1, %s9
  %s12 = scalar_select 0, %s11, %s9
  $region1: #{tpu_custom_call.1} parent=0
    #allocation3 [shape = 'u8[4096]{0}', space=vmem, size = 0x1000, scoped, tag = 'input window, operand 2, single buffered']
    #allocation4 [shape = 's32[2]{0}', space=sflag, size = 0x8, scoped, tag = 'scoped memory for tpu_custom_call.1']
    #allocation5 [shape = 's32[2]{0}', space=sflag, size = 0x8, scoped, tag = 'scoped memory for tpu_custom_call.1']
    #allocation6 [shape = 'u8[12288]{0}', space=vmem, size = 0x3000, scoped, tag = 'input window, operand 4, single buffered']
    #allocation7 [shape = 's32[1]{0}', space=sflag, size = 0x4, scoped, tag = 'scoped memory for tpu_custom_call.1']
    #allocation8 [shape = 'u8[12288]{0}', space=vmem, size = 0x3000, scoped, tag = 'input window, operand 5, single buffered']
    #allocation9 [shape = 'u8[4096]{0}', space=vmem, size = 0x1000, scoped, tag = 'input window, operand 6, single buffered']
    #allocation10 [shape = 's32[1]{0}', space=sflag, size = 0x4, scoped, tag = 'scoped memory for tpu_custom_call.1']
    #allocation11 [shape = 'u8[8192]{0}', space=vmem, size = 0x2000, scoped, tag = 'output window, operand 0']
    %13 = vsyncpa [#allocation4], 0
    %14 = vsyncpa [#allocation7], 0
    %15 = vsyncpa [#allocation10], 0
    %16 = vsyncpa [#allocation5], 0
    %s17 = scalar_lea.sflag [#allocation5], 1
    %18 = vsyncpa %s17, 0
    loop: start=0, step=1, limit=4
    $region2: #{tpu_custom_call.1} parent=1 // loop_pre_header
      _
    $region3: #{tpu_custom_call.1} parent=1 // loop_header
      %s20 = sphi 0, %s24
      %p21 = scmp.ge.s32.totalorder %s20, 4
      %s30 = sphi 0, %s32
      %s33 = sphi 0, %s30
      %s34 = sphi 0, %s33
      %s50 = sphi 0, %s34
      %s56 = sphi 0, %s58
      %s59 = sphi 0, %s56
      %s60 = sphi 0, %s59
      %s76 = sphi 0, %s60
      %s80 = sphi 0, %s80
      %s82 = sphi 0, %s80
      %s83 = sphi 0, %s82
      %s97 = sphi 0, %s83
      %s101 = sphi 0, %s101
      %s103 = sphi 0, %s101
      %s104 = sphi 0, %s103
      %s118 = sphi 0, %s104
      %s122 = sphi 0, %s122
      %s124 = sphi 0, %s122
      %s125 = sphi 0, %s124
      %s139 = sphi 0, %s125
      %s143 = sphi 0, %s143
      %s145 = sphi 0, %s143
      %s146 = sphi 0, %s145
      %s160 = sphi 0, %s146
      %s164 = sphi 0, %s164
      %s166 = sphi 0, %s164
      %s167 = sphi 0, %s166
      %s181 = sphi 0, %s167
      %s185 = sphi 0, %s185
      %s187 = sphi 0, %s185
      %s188 = sphi 0, %s187
      %s202 = sphi 0, %s188
      %s208 = sphi 0, %s210
      %s211 = sphi 0, %s208
      %s212 = sphi 0, %s211
      %s228 = sphi 0, %s212
    $region4: #{tpu_custom_call.1} parent=1 // loop_header_branch
      %23 = sbr.rel (%p21) target = $region8
    $region5: #{tpu_custom_call.1} parent=1 // loop_body
      %s25 = ssub.s32 %s20, 1
      %s26 = ssub.s32 %s20, 2
      %s27 = sadd.s32 %s20, 1
      %s28 = ssub.s32 %s20, %s27
      %p29 = scmp.eq.s32.totalorder %s28, 0
      %s31 = sadd.s32 %s30, 1
      %s32 = scalar_select %p29, %s30, %s31
      %p35 = pneg %p29
      %p36 = scmp.eq.s32.totalorder %s20, 1
      %p37 = por %p35, %p36
      %p38 = scmp.ne.s32.totalorder %s30, %s33
      %p39 = scmp.eq.s32.totalorder %s20, 0
      %p40 = por %p38, %p39
      %p41 = scmp.ne.s32.totalorder %s30, %s33
      %p42 = scmp.eq.s32.totalorder %s25, 1
      %p43 = por %p41, %p42
      %p44 = scmp.ne.s32.totalorder %s33, %s34
      %p45 = scmp.eq.s32.totalorder %s25, 0
      %p46 = por %p44, %p45
      %p47 = scmp.ne.s32.totalorder %s33, %s34
      %p48 = scmp.eq.s32.totalorder %s26, 1
      %p49 = por %p47, %p48
      %p51 = scmp.ne.s32.totalorder %s34, %s50
      %p52 = scmp.eq.s32.totalorder %s26, 0
      %p53 = por %p51, %p52
      %s54 = ssub.s32 %s20, %s27
      %p55 = scmp.eq.s32.totalorder %s54, 0
      %s57 = sadd.s32 %s56, 1
      %s58 = scalar_select %p55, %s56, %s57
      %p61 = pneg %p55
      %p62 = scmp.eq.s32.totalorder %s20, 1
      %p63 = por %p61, %p62
      %p64 = scmp.ne.s32.totalorder %s56, %s59
      %p65 = scmp.eq.s32.totalorder %s20, 0
      %p66 = por %p64, %p65
      %p67 = scmp.ne.s32.totalorder %s56, %s59
      %p68 = scmp.eq.s32.totalorder %s25, 1
      %p69 = por %p67, %p68
      %p70 = scmp.ne.s32.totalorder %s59, %s60
      %p71 = scmp.eq.s32.totalorder %s25, 0
      %p72 = por %p70, %p71
      %p73 = scmp.ne.s32.totalorder %s59, %s60
      %p74 = scmp.eq.s32.totalorder %s26, 1
      %p75 = por %p73, %p74
      %p77 = scmp.ne.s32.totalorder %s60, %s76
      %p78 = scmp.eq.s32.totalorder %s26, 0
      %p79 = por %p77, %p78
      %s81 = sadd.s32 %s80, 1
      %p84 = scmp.eq.s32.totalorder %s20, 1
      %p85 = scmp.ne.s32.totalorder %s80, %s82
      %p86 = scmp.eq.s32.totalorder %s20, 0
      %p87 = por %p85, %p86
      %p88 = scmp.ne.s32.totalorder %s80, %s82
      %p89 = scmp.eq.s32.totalorder %s25, 1
      %p90 = por %p88, %p89
      %p91 = scmp.ne.s32.totalorder %s82, %s83
      %p92 = scmp.eq.s32.totalorder %s25, 0
      %p93 = por %p91, %p92
      %p94 = scmp.ne.s32.totalorder %s82, %s83
      %p95 = scmp.eq.s32.totalorder %s26, 1
      %p96 = por %p94, %p95
      %p98 = scmp.ne.s32.totalorder %s83, %s97
      %p99 = scmp.eq.s32.totalorder %s26, 0
      %p100 = por %p98, %p99
      %s102 = sadd.s32 %s101, 1
      %p105 = scmp.eq.s32.totalorder %s20, 1
      %p106 = scmp.ne.s32.totalorder %s101, %s103
      %p107 = scmp.eq.s32.totalorder %s20, 0
      %p108 = por %p106, %p107
      %p109 = scmp.ne.s32.totalorder %s101, %s103
      %p110 = scmp.eq.s32.totalorder %s25, 1
      %p111 = por %p109, %p110
      %p112 = scmp.ne.s32.totalorder %s103, %s104
      %p113 = scmp.eq.s32.totalorder %s25, 0
      %p114 = por %p112, %p113
      %p115 = scmp.ne.s32.totalorder %s103, %s104
      %p116 = scmp.eq.s32.totalorder %s26, 1
      %p117 = por %p115, %p116
      %p119 = scmp.ne.s32.totalorder %s104, %s118
      %p120 = scmp.eq.s32.totalorder %s26, 0
      %p121 = por %p119, %p120
      %s123 = sadd.s32 %s122, 1
      %p126 = scmp.eq.s32.totalorder %s20, 1
      %p127 = scmp.ne.s32.totalorder %s122, %s124
      %p128 = scmp.eq.s32.totalorder %s20, 0
      %p129 = por %p127, %p128
      %p130 = scmp.ne.s32.totalorder %s122, %s124
      %p131 = scmp.eq.s32.totalorder %s25, 1
      %p132 = por %p130, %p131
      %p133 = scmp.ne.s32.totalorder %s124, %s125
      %p134 = scmp.eq.s32.totalorder %s25, 0
      %p135 = por %p133, %p134
      %p136 = scmp.ne.s32.totalorder %s124, %s125
      %p137 = scmp.eq.s32.totalorder %s26, 1
      %p138 = por %p136, %p137
      %p140 = scmp.ne.s32.totalorder %s125, %s139
      %p141 = scmp.eq.s32.totalorder %s26, 0
      %p142 = por %p140, %p141
      %s144 = sadd.s32 %s143, 1
      %p147 = scmp.eq.s32.totalorder %s20, 1
      %p148 = scmp.ne.s32.totalorder %s143, %s145
      %p149 = scmp.eq.s32.totalorder %s20, 0
      %p150 = por %p148, %p149
      %p151 = scmp.ne.s32.totalorder %s143, %s145
      %p152 = scmp.eq.s32.totalorder %s25, 1
      %p153 = por %p151, %p152
      %p154 = scmp.ne.s32.totalorder %s145, %s146
      %p155 = scmp.eq.s32.totalorder %s25, 0
      %p156 = por %p154, %p155
      %p157 = scmp.ne.s32.totalorder %s145, %s146
      %p158 = scmp.eq.s32.totalorder %s26, 1
      %p159 = por %p157, %p158
      %p161 = scmp.ne.s32.totalorder %s146, %s160
      %p162 = scmp.eq.s32.totalorder %s26, 0
      %p163 = por %p161, %p162
      %s165 = sadd.s32 %s164, 1
      %p168 = scmp.eq.s32.totalorder %s20, 1
      %p169 = scmp.ne.s32.totalorder %s164, %s166
      %p170 = scmp.eq.s32.totalorder %s20, 0
      %p171 = por %p169, %p170
      %p172 = scmp.ne.s32.totalorder %s164, %s166
      %p173 = scmp.eq.s32.totalorder %s25, 1
      %p174 = por %p172, %p173
      %p175 = scmp.ne.s32.totalorder %s166, %s167
      %p176 = scmp.eq.s32.totalorder %s25, 0
      %p177 = por %p175, %p176
      %p178 = scmp.ne.s32.totalorder %s166, %s167
      %p179 = scmp.eq.s32.totalorder %s26, 1
      %p180 = por %p178, %p179
      %p182 = scmp.ne.s32.totalorder %s167, %s181
      %p183 = scmp.eq.s32.totalorder %s26, 0
      %p184 = por %p182, %p183
      %s186 = sadd.s32 %s185, 1
      %p189 = scmp.eq.s32.totalorder %s20, 1
      %p190 = scmp.ne.s32.totalorder %s185, %s187
      %p191 = scmp.eq.s32.totalorder %s20, 0
      %p192 = por %p190, %p191
      %p193 = scmp.ne.s32.totalorder %s185, %s187
      %p194 = scmp.eq.s32.totalorder %s25, 1
      %p195 = por %p193, %p194
      %p196 = scmp.ne.s32.totalorder %s187, %s188
      %p197 = scmp.eq.s32.totalorder %s25, 0
      %p198 = por %p196, %p197
      %p199 = scmp.ne.s32.totalorder %s187, %s188
      %p200 = scmp.eq.s32.totalorder %s26, 1
      %p201 = por %p199, %p200
      %p203 = scmp.ne.s32.totalorder %s188, %s202
      %p204 = scmp.eq.s32.totalorder %s26, 0
      %p205 = por %p203, %p204
      %s206 = ssub.s32 %s20, %s27
      %p207 = scmp.eq.s32.totalorder %s206, 0
      %s209 = sadd.s32 %s208, 1
      %s210 = scalar_select %p207, %s208, %s209
      %p213 = pneg %p207
      %p214 = scmp.eq.s32.totalorder %s20, 1
      %p215 = por %p213, %p214
      %p216 = scmp.ne.s32.totalorder %s208, %s211
      %p217 = scmp.eq.s32.totalorder %s20, 0
      %p218 = por %p216, %p217
      %p219 = scmp.ne.s32.totalorder %s208, %s211
      %p220 = scmp.eq.s32.totalorder %s25, 1
      %p221 = por %p219, %p220
      %p222 = scmp.ne.s32.totalorder %s211, %s212
      %p223 = scmp.eq.s32.totalorder %s25, 0
      %p224 = por %p222, %p223
      %p225 = scmp.ne.s32.totalorder %s211, %s212
      %p226 = scmp.eq.s32.totalorder %s26, 1
      %p227 = por %p225, %p226
      %p229 = scmp.ne.s32.totalorder %s212, %s228
      %p230 = scmp.eq.s32.totalorder %s26, 0
      %p231 = por %p229, %p230
      %p232 = scmp.le.s32.totalorder 1, %s20
      %p233 = scmp.lt.s32.totalorder %s20, 3
      %p234 = pnand %p232, %p233
      %p235 = pneg %p234
      // Predicated region
      $region9: #{tpu_custom_call.1} parent=5 // pred_check
        _
      $region10: #{tpu_custom_call.1} parent=5 // pred_check_branch
        %237 = sbr.rel (%p234) target = $region12
      $region11: #{tpu_custom_call.1} parent=5 // pred_region
        %s238 = ssub.s32 %s20, 1
        // Predicated region
        $region13: #{tpu_custom_call.1} parent=11 // pred_check
          %p239 = pneg %p93
        $region14: #{tpu_custom_call.1} parent=11 // pred_check_branch
          %241 = sbr.rel (%p239) target = $region16
        $region15: #{tpu_custom_call.1} parent=11 // pred_region
          %243 = vsyncadd [#allocation4], 0
          %s245 = sshll.u32 %s2, 4
          %s246 = int_to_ptr.hbm [resolvable:$true] %s245
          %s247 = sshll.u32 [#allocation3], 4
          %s248 = int_to_ptr.vmem [resolvable:$true] %s247
          %250 = dma.hbm_to_vmem [thread:$0]  %s246, 128, %s248, [#allocation4]
        $region16: #{tpu_custom_call.1} parent=11 // pred_fallthru
          _
        // Predicated region
        $region17: #{tpu_custom_call.1} parent=11 // pred_check
          %p251 = pneg %p114
        $region18: #{tpu_custom_call.1} parent=11 // pred_check_branch
          %253 = sbr.rel (%p251) target = $region20
        $region19: #{tpu_custom_call.1} parent=11 // pred_region
          _
        $region20: #{tpu_custom_call.1} parent=11 // pred_fallthru
          _
        // Predicated region
        $region21: #{tpu_custom_call.1} parent=11 // pred_check
          %p254 = pneg %p135
        $region22: #{tpu_custom_call.1} parent=11 // pred_check_branch
          %256 = sbr.rel (%p254) target = $region24
        $region23: #{tpu_custom_call.1} parent=11 // pred_region
          %258 = vsyncadd [#allocation7], 0
          %s259 = sshll.u32 %s4, 4
          %s260 = int_to_ptr.hbm [resolvable:$true] %s259
          %s261 = sshll.u32 [#allocation6], 4
          %s262 = int_to_ptr.vmem [resolvable:$true] %s261
          %267 = dma.hbm_to_vmem [thread:$0]  %s260, 384, %s262, [#allocation7], 128, 128, 8
        $region24: #{tpu_custom_call.1} parent=11 // pred_fallthru
          _
        // Predicated region
        $region25: #{tpu_custom_call.1} parent=11 // pred_check
          %p268 = pneg %p156
        $region26: #{tpu_custom_call.1} parent=11 // pred_check_branch
          %270 = sbr.rel (%p268) target = $region28
        $region27: #{tpu_custom_call.1} parent=11 // pred_region
          %272 = vsyncadd [#allocation7], 0
          %s273 = sshll.u32 %s5, 4
          %s274 = int_to_ptr.hbm [resolvable:$true] %s273
          %s275 = sshll.u32 [#allocation8], 4
          %s276 = int_to_ptr.vmem [resolvable:$true] %s275
          %281 = dma.hbm_to_vmem [thread:$0]  %s274, 384, %s276, [#allocation7], 128, 128, 8
        $region28: #{tpu_custom_call.1} parent=11 // pred_fallthru
          _
        // Predicated region
        $region29: #{tpu_custom_call.1} parent=11 // pred_check
          %p282 = pneg %p177
        $region30: #{tpu_custom_call.1} parent=11 // pred_check_branch
          %284 = sbr.rel (%p282) target = $region32
        $region31: #{tpu_custom_call.1} parent=11 // pred_region
          %286 = vsyncadd [#allocation10], 0
          %s288 = sshll.u32 %s6, 4
          %s289 = int_to_ptr.hbm [resolvable:$true] %s288
          %s290 = sshll.u32 [#allocation9], 4
          %s291 = int_to_ptr.vmem [resolvable:$true] %s290
          %293 = dma.hbm_to_vmem [thread:$0]  %s289, 128, %s291, [#allocation10]
        $region32: #{tpu_custom_call.1} parent=11 // pred_fallthru
          _
        // Predicated region
        $region33: #{tpu_custom_call.1} parent=11 // pred_check
          %p294 = pneg %p198
        $region34: #{tpu_custom_call.1} parent=11 // pred_check_branch
          %296 = sbr.rel (%p294) target = $region36
        $region35: #{tpu_custom_call.1} parent=11 // pred_region
          _
        $region36: #{tpu_custom_call.1} parent=11 // pred_fallthru
          _
      $region12: #{tpu_custom_call.1} parent=5 // pred_fallthru
        _
      %p297 = scmp.lt.s32.totalorder %s20, 2
      // Predicated region
      $region37: #{tpu_custom_call.1} parent=5 // pred_check
        %p298 = pneg %p297
      $region38: #{tpu_custom_call.1} parent=5 // pred_check_branch
        %300 = sbr.rel (%p298) target = $region40
      $region39: #{tpu_custom_call.1} parent=5 // pred_region
        // Predicated region
        $region41: #{tpu_custom_call.1} parent=39 // pred_check
          %p301 = pneg %p40
        $region42: #{tpu_custom_call.1} parent=39 // pred_check_branch
          %303 = sbr.rel (%p301) target = $region44
        $region43: #{tpu_custom_call.1} parent=39 // pred_region
          %p304 = scmp.lt.s32.totalorder %s20, 1
          %s305 = scalar_select %p304, %s20, 1
          %s306 = smul.addr %s305, 8
          %s307 = scalar_lea.vmem %s0, %s306
        $region44: #{tpu_custom_call.1} parent=39 // pred_fallthru
          _
        // Predicated region
        $region45: #{tpu_custom_call.1} parent=39 // pred_check
          %p308 = pneg %p66
        $region46: #{tpu_custom_call.1} parent=39 // pred_check_branch
          %310 = sbr.rel (%p308) target = $region48
        $region47: #{tpu_custom_call.1} parent=39 // pred_region
          %p311 = scmp.lt.s32.totalorder %s20, 1
          %s312 = scalar_select %p311, %s20, 1
          %s313 = scalar_lea.vmem %s1, %s312
        $region48: #{tpu_custom_call.1} parent=39 // pred_fallthru
          _
      $region40: #{tpu_custom_call.1} parent=5 // pred_fallthru
        _
      %p314 = scmp.le.s32.totalorder 1, %s20
      %p315 = scmp.lt.s32.totalorder %s20, 3
      %p316 = pnand %p314, %p315
      %p317 = pneg %p316
      // Predicated region
      $region49: #{tpu_custom_call.1} parent=5 // pred_check
        _
      $region50: #{tpu_custom_call.1} parent=5 // pred_check_branch
        %319 = sbr.rel (%p316) target = $region52
      $region51: #{tpu_custom_call.1} parent=5 // pred_region
        %s320 = ssub.s32 %s20, 1
        // Predicated region
        $region53: #{tpu_custom_call.1} parent=51 // pred_check
          %p321 = pneg %p93
        $region54: #{tpu_custom_call.1} parent=51 // pred_check_branch
          %323 = sbr.rel (%p321) target = $region56
        $region55: #{tpu_custom_call.1} parent=51 // pred_region
          %325 = dma.done [#allocation4], 128
        $region56: #{tpu_custom_call.1} parent=51 // pred_fallthru
          _
        // Predicated region
        $region57: #{tpu_custom_call.1} parent=51 // pred_check
          %p326 = pneg %p135
        $region58: #{tpu_custom_call.1} parent=51 // pred_check_branch
          %328 = sbr.rel (%p326) target = $region60
        $region59: #{tpu_custom_call.1} parent=51 // pred_region
          %330 = dma.done [#allocation7], 384
        $region60: #{tpu_custom_call.1} parent=51 // pred_fallthru
          _
        // Predicated region
        $region61: #{tpu_custom_call.1} parent=51 // pred_check
          %p331 = pneg %p156
        $region62: #{tpu_custom_call.1} parent=51 // pred_check_branch
          %333 = sbr.rel (%p331) target = $region64
        $region63: #{tpu_custom_call.1} parent=51 // pred_region
          %335 = dma.done [#allocation7], 384
        $region64: #{tpu_custom_call.1} parent=51 // pred_fallthru
          _
        // Predicated region
        $region65: #{tpu_custom_call.1} parent=51 // pred_check
          %p336 = pneg %p177
        $region66: #{tpu_custom_call.1} parent=51 // pred_check_branch
          %338 = sbr.rel (%p336) target = $region68
        $region67: #{tpu_custom_call.1} parent=51 // pred_region
          %340 = dma.done [#allocation10], 128
        $region68: #{tpu_custom_call.1} parent=51 // pred_fallthru
          _
        %p341 = scmp.lt.s32.totalorder %s25, 1
        %s342 = scalar_select %p341, %s25, 1
        %s343 = smul.addr %s342, 8
        %s344 = scalar_lea.vmem %s0, %s343
        %p345 = pneg %p46
        %p346 = pneg %p43
        %p347 = scmp.lt.s32.totalorder %s25, 1
        %s348 = scalar_select %p347, %s25, 1
        %s349 = scalar_lea.vmem %s1, %s348
        %p350 = pneg %p72
        %p351 = pneg %p69
        %p352 = pneg %p93
        %p353 = pneg %p90
        %p354 = pneg %p114
        %p355 = pneg %p111
        %p356 = pneg %p135
        %p357 = pneg %p132
        %p358 = pneg %p156
        %p359 = pneg %p153
        %p360 = pneg %p177
        %p361 = pneg %p174
        %p362 = pneg %p198
        %p363 = pneg %p195
        %p364 = pneg %p224
        %p365 = pneg %p221
        %s366 = sand.u32 %s211, 1
        %s367 = scalar_lea.sflag [#allocation5], %s366
        %s368 = sand.u32 %s211, 1
        %s369 = smul.addr %s368, 8
        %s370 = scalar_lea.vmem [#allocation11], %s369
        %p371 = scmp.lt.s32.totalorder %s25, 1
        %s372 = scalar_select %p371, %s25, 1
        %s373 = smul.addr %s372, 8
        %s374 = scalar_lea.vmem %s0, %s373
        %p375 = scmp.lt.s32.totalorder %s25, 1
        %s376 = scalar_select %p375, %s25, 1
        %s377 = scalar_lea.vmem %s1, %s376
        %v378 = vld [vmem:[%s377] sm:$0x1]
        %v379 = vld [vmem:[#allocation3] sm:$0xff]
        %v380 = vld [vmem:[%s374] sm:$0xff]
        %v381 = vld [vmem:[%s3] sm:$0xff]
        %383 = vset.pattern.permute.xlu0 0
        %384 = vperm.xlu0 %383, %v381
        %v385 = vpop.permute.xlu0 %384
        %vm387 = vcmask 64512
        %v389 = vsel %vm387, %v379, 0
        %391 = vmatpush.msra.mxu0 0.0
        %392 = vmatpush.msra.mxu0 0.0
        %393 = vmatpush.msra.mxu0 0.0
        %394 = vmatpush.msra.mxu0 0.0
        %395 = vmatpush.msra.mxu0 0.0
        %396 = vmatpush.msra.mxu0 0.0
        %397 = vmatpush.msra.mxu0 0.0
        %398 = vmatpush.msra.mxu0 0.0
        %399 = vmatpush.msra.mxu0 0.0
        %400 = vmatpush.msra.mxu0 0.0
        %401 = vmatpush.msra.mxu0 0.0
        %402 = vmatpush.msra.mxu0 0.0
        %403 = vmatpush.msra.mxu0 0.0
        %404 = vmatpush.msra.mxu0 0.0
        %405 = vmatpush.msra.mxu0 0.0
        %406 = vmatpush.msra.mxu0 %v380
        %407 = vmatmul.f32.gmra.mxu0 %v389
        %v408 = vpop.f32.mrf.mxu0
        %v409 = vadd.f32 %v385, %v408
        %410 = vdwg.mxu0
        %411 = vst [vmem:[#allocation2] sm:$0xff] 0.0
        %412 = vst [vmem:[#allocation2 + $0x10] sm:$0xff] 0.0
        %v413 = vld [vmem:[#allocation6] sm:$0xff]
        %v415 = vperm.slane %v378, 0
        %v417 = vmul.f32 %v409, %v415
        %418 = vst [vmem:[#allocation2 + $0x8] sm:$0xff] %v417
        %v419 = vld [vmem:[#allocation2] sm:$0xff]
        %v420 = vld [vmem:[#allocation2 + $0x8] sm:$0xff]
        %v421 = vld [vmem:[#allocation2 + $0x10] sm:$0xff]
        %423 = vset.pattern.permute.xlu0 3
        %424 = vperm.xlu0 %423, %v413
        %v425 = vpop.permute.xlu0 %424
        %v427 = vadd.f32 %v425, 0.0
        %428 = vset.pattern.permute.xlu0 0
        %429 = vperm.xlu0 %428, %v413
        %v430 = vpop.permute.xlu0 %429
        %v432 = vmul.f32 %v430, %v419
        %v433 = vmul.f32 %v430, %v420
        %v434 = vadd.f32 %v427, %v432
        %v435 = vadd.f32 %v427, %v433
        %436 = vset.pattern.permute.xlu0 1
        %437 = vperm.xlu0 %436, %v413
        %v438 = vpop.permute.xlu0 %437
        %v440 = vmul.f32 %v438, %v420
        %442 = vrot.lane.b32.xlu0 %v440, 127
        %v443 = vpop.permute.xlu0 %442
        %v445 = vadd.f32 %v434, %v443
        %v446 = vadd.f32 %v435, %v443
        %447 = vset.pattern.permute.xlu0 2
        %448 = vperm.xlu0 %447, %v413
        %v449 = vpop.permute.xlu0 %448
        %v451 = vmul.f32 %v449, %v420
        %v452 = vmul.f32 %v449, %v421
        %455 = vrot.lane.b32.xlu0 %v451, 126
        %v456 = vpop.permute.xlu0 %455
        %457 = vrot.lane.b32.xlu0 %v452, 126
        %v458 = vpop.permute.xlu0 %457
        %vm459 = vcmask 1031168
        %v460 = vsel %vm459, %v456, %v458
        %v463 = vadd.f32 %v445, %v456
        %v464 = vadd.f32 %v446, %v460
        %vm465 = vcmask 1048568
        %v466 = vsel %vm465, %v463, 0.0
        %v467 = vrot.slane %v466, 4
        %v468 = vadd.f32 %v466, %v467
        %v469 = vrot.slane %v468, 2
        %v470 = vadd.f32 %v468, %v469
        %v471 = vrot.slane %v470, 1
        %v472 = vadd.f32 %v470, %v471
        %vm473 = vcmask 1039360
        %v474 = vsel %vm473, %v464, 0.0
        %v475 = vrot.slane %v474, 4
        %v476 = vadd.f32 %v474, %v475
        %v477 = vrot.slane %v476, 2
        %v478 = vadd.f32 %v476, %v477
        %v479 = vrot.slane %v478, 1
        %v480 = vadd.f32 %v478, %v479
        %v481 = vmul.f32 %v472, 0.125
        %v482 = vmul.f32 %v480, 0.125
        %v483 = vmul.f32 %v463, %v463
        %v484 = vmul.f32 %v464, %v464
        %v485 = vsel %vm465, %v483, 0.0
        %v486 = vrot.slane %v485, 4
        %v487 = vadd.f32 %v485, %v486
        %v488 = vrot.slane %v487, 2
        %v489 = vadd.f32 %v487, %v488
        %v490 = vrot.slane %v489, 1
        %v491 = vadd.f32 %v489, %v490
        %v492 = vsel %vm473, %v484, 0.0
        %v493 = vrot.slane %v492, 4
        %v494 = vadd.f32 %v492, %v493
        %v495 = vrot.slane %v494, 2
        %v496 = vadd.f32 %v494, %v495
        %v497 = vrot.slane %v496, 1
        %v498 = vadd.f32 %v496, %v497
        %v499 = vmul.f32 %v491, 0.125
        %v500 = vmul.f32 %v498, 0.125
        %v501 = vmul.f32 %v481, %v481
        %v502 = vmul.f32 %v482, %v482
        %v503 = vsub.f32 %v499, %v501
        %v504 = vsub.f32 %v500, %v502
        %v505 = vsub.f32 %v463, %v481
        %v506 = vsub.f32 %v464, %v482
        %v507 = vadd.f32 %v503, 1e-05
        %v508 = vadd.f32 %v504, 1e-05
        %v509 = vrsqrt.pop %v507
        %v510 = vmul.f32 %v509, %v507
        %v511 = vmul.f32 %v510, %v509
        %v512 = vmul.f32 0.5, %v511
        %v513 = vsub.f32 1.5, %v512
        %v514 = vmul.f32 %v509, %v513
        %vm515 = vweird.f32 %v507
        %vm516 = vweird.f32 %v509
        %vm517 = vmor %vm515, %vm516
        %v518 = vsel %vm517, %v509, %v514
        %v519 = vrsqrt.pop %v508
        %v520 = vmul.f32 %v519, %v508
        %v521 = vmul.f32 %v520, %v519
        %v522 = vmul.f32 0.5, %v521
        %v523 = vsub.f32 1.5, %v522
        %v524 = vmul.f32 %v519, %v523
        %vm525 = vweird.f32 %v508
        %vm526 = vweird.f32 %v519
        %vm527 = vmor %vm525, %vm526
        %v528 = vsel %vm527, %v519, %v524
        %v529 = vmul.f32 %v505, %v518
        %v530 = vmul.f32 %v506, %v528
        %531 = vset.pattern.permute.xlu0 4
        %532 = vperm.xlu0 %531, %v413
        %v533 = vpop.permute.xlu0 %532
        %v535 = vmul.f32 %v529, %v533
        %v536 = vmul.f32 %v530, %v533
        %537 = vset.pattern.permute.xlu0 5
        %538 = vperm.xlu0 %537, %v413
        %v539 = vpop.permute.xlu0 %538
        %v541 = vadd.f32 %v535, %v539
        %v542 = vadd.f32 %v536, %v539
        %v543 = vmul.f32 %v541, 0.5
        %v544 = vmul.f32 %v542, 0.5
        %v545 = vmul.f32 %v541, 0.044715
        %v546 = vmul.f32 %v542, 0.044715
        %v547 = vmul.f32 %v545, %v541
        %v548 = vmul.f32 %v546, %v542
        %v549 = vmul.f32 %v547, %v541
        %v550 = vmul.f32 %v548, %v542
        %v551 = vadd.f32 %v541, %v549
        %v552 = vadd.f32 %v542, %v550
        %v553 = vmul.f32 %v551, 0.7978846
        %v554 = vmul.f32 %v552, 0.7978846
        %v555 = vtanh.pop %v553
        %v556 = vtanh.pop %v554
        %v557 = vadd.f32 %v555, 1.0
        %v558 = vadd.f32 %v556, 1.0
        %v559 = vmul.f32 %v543, %v557
        %v560 = vmul.f32 %v544, %v558
        %v561 = vld [vmem:[#allocation8] sm:$0xff]
        %562 = vset.pattern.permute.xlu0 6
        %563 = vperm.xlu0 %562, %v413
        %v564 = vpop.permute.xlu0 %563
        %568 = vrot.lane.b32.xlu0 %v559, 1
        %v569 = vpop.permute.xlu0 %568
        %570 = vrot.lane.b32.xlu0 %v560, 1
        %v571 = vpop.permute.xlu0 %570
        %vm572 = vcmask 7168
        %v573 = vsel %vm572, %v569, %v571
        %v576 = vsel %vm387, %v561, 0
        %578 = vmatpush.msra.mxu0 0.0
        %579 = vmatpush.msra.mxu0 0.0
        %580 = vmatpush.msra.mxu0 0.0
        %581 = vmatpush.msra.mxu0 0.0
        %582 = vmatpush.msra.mxu0 0.0
        %583 = vmatpush.msra.mxu0 0.0
        %584 = vmatpush.msra.mxu0 0.0
        %585 = vmatpush.msra.mxu0 0.0
        %586 = vmatpush.msra.mxu0 0.0
        %587 = vmatpush.msra.mxu0 0.0
        %588 = vmatpush.msra.mxu0 0.0
        %589 = vmatpush.msra.mxu0 0.0
        %590 = vmatpush.msra.mxu0 0.0
        %591 = vmatpush.msra.mxu0 0.0
        %592 = vmatpush.msra.mxu0 0.0
        %593 = vmatpush.msra.mxu0 %v573
        %594 = vmatmul.f32.gmra.mxu0 %v576
        %v595 = vpop.f32.mrf.mxu0
        %v596 = vadd.f32 %v564, %v595
        %597 = vdwg.mxu0
        %v598 = vrot.slane %v596, 4
        %v599 = vadd.f32 %v596, %v598
        %v600 = vrot.slane %v599, 2
        %v601 = vadd.f32 %v599, %v600
        %v602 = vrot.slane %v601, 1
        %v603 = vadd.f32 %v601, %v602
        %v604 = vmul.f32 %v603, 0.125
        %v605 = vmul.f32 %v596, %v596
        %v606 = vrot.slane %v605, 4
        %v607 = vadd.f32 %v605, %v606
        %v608 = vrot.slane %v607, 2
        %v609 = vadd.f32 %v607, %v608
        %v610 = vrot.slane %v609, 1
        %v611 = vadd.f32 %v609, %v610
        %v612 = vmul.f32 %v611, 0.125
        %v613 = vmul.f32 %v604, %v604
        %v614 = vsub.f32 %v612, %v613
        %v615 = vsub.f32 %v596, %v604
        %v616 = vadd.f32 %v614, 1e-05
        %v617 = vrsqrt.pop %v616
        %v618 = vmul.f32 %v617, %v616
        %v619 = vmul.f32 %v618, %v617
        %v620 = vmul.f32 0.5, %v619
        %v621 = vsub.f32 1.5, %v620
        %v622 = vmul.f32 %v617, %v621
        %vm623 = vweird.f32 %v616
        %vm624 = vweird.f32 %v617
        %vm625 = vmor %vm623, %vm624
        %v626 = vsel %vm625, %v617, %v622
        %v627 = vmul.f32 %v615, %v626
        %628 = vset.pattern.permute.xlu0 7
        %629 = vperm.xlu0 %628, %v413
        %v630 = vpop.permute.xlu0 %629
        %v632 = vmul.f32 %v627, %v630
        %633 = vset.pattern.permute.xlu0 8
        %634 = vperm.xlu0 %633, %v413
        %v635 = vpop.permute.xlu0 %634
        %v637 = vadd.f32 %v632, %v635
        %v638 = vmul.f32 %v637, 0.5
        %v639 = vmul.f32 %v637, 0.044715
        %v640 = vmul.f32 %v639, %v637
        %v641 = vmul.f32 %v640, %v637
        %v642 = vadd.f32 %v637, %v641
        %v643 = vmul.f32 %v642, 0.7978846
        %v644 = vtanh.pop %v643
        %v645 = vadd.f32 %v644, 1.0
        %v646 = vmul.f32 %v638, %v645
        %v647 = vadd.f32 %v409, %v646
        %s648 = scalar_lea.vmem [#allocation6], 8
        %v649 = vld [vmem:[%s648] sm:$0xff]
        %v650 = vmul.f32 %v647, %v415
        %651 = vst [vmem:[#allocation2 + $0x8] sm:$0xff] %v650
        %v652 = vld [vmem:[#allocation2] sm:$0xff]
        %v653 = vld [vmem:[#allocation2 + $0x8] sm:$0xff]
        %v654 = vld [vmem:[#allocation2 + $0x10] sm:$0xff]
        %656 = vset.pattern.permute.xlu0 3
        %657 = vperm.xlu0 %656, %v649
        %v658 = vpop.permute.xlu0 %657
        %v660 = vadd.f32 %v658, 0.0
        %661 = vset.pattern.permute.xlu0 0
        %662 = vperm.xlu0 %661, %v649
        %v663 = vpop.permute.xlu0 %662
        %v665 = vmul.f32 %v663, %v652
        %v666 = vmul.f32 %v663, %v653
        %v667 = vadd.f32 %v660, %v665
        %v668 = vadd.f32 %v660, %v666
        %669 = vset.pattern.permute.xlu0 1
        %670 = vperm.xlu0 %669, %v649
        %v671 = vpop.permute.xlu0 %670
        %v673 = vmul.f32 %v671, %v653
        %675 = vrot.lane.b32.xlu0 %v673, 125
        %v676 = vpop.permute.xlu0 %675
        %v678 = vadd.f32 %v667, %v676
        %v679 = vadd.f32 %v668, %v676
        %680 = vset.pattern.permute.xlu0 2
        %681 = vperm.xlu0 %680, %v649
        %v682 = vpop.permute.xlu0 %681
        %v684 = vmul.f32 %v682, %v653
        %v685 = vmul.f32 %v682, %v654
        %688 = vrot.lane.b32.xlu0 %v684, 122
        %v689 = vpop.permute.xlu0 %688
        %690 = vrot.lane.b32.xlu0 %v685, 122
        %v691 = vpop.permute.xlu0 %690
        %vm692 = vcmask 998400
        %v693 = vsel %vm692, %v689, %v691
        %v696 = vadd.f32 %v678, %v689
        %v697 = vadd.f32 %v679, %v693
        %vm698 = vcmask 1048552
        %v699 = vsel %vm698, %v696, 0.0
        %v700 = vrot.slane %v699, 4
        %v701 = vadd.f32 %v699, %v700
        %v702 = vrot.slane %v701, 2
        %v703 = vadd.f32 %v701, %v702
        %v704 = vrot.slane %v703, 1
        %v705 = vadd.f32 %v703, %v704
        %vm706 = vcmask 1022976
        %v707 = vsel %vm706, %v697, 0.0
        %v708 = vrot.slane %v707, 4
        %v709 = vadd.f32 %v707, %v708
        %v710 = vrot.slane %v709, 2
        %v711 = vadd.f32 %v709, %v710
        %v712 = vrot.slane %v711, 1
        %v713 = vadd.f32 %v711, %v712
        %v714 = vmul.f32 %v705, 0.125
        %v715 = vmul.f32 %v713, 0.125
        %v716 = vmul.f32 %v696, %v696
        %v717 = vmul.f32 %v697, %v697
        %v718 = vsel %vm698, %v716, 0.0
        %v719 = vrot.slane %v718, 4
        %v720 = vadd.f32 %v718, %v719
        %v721 = vrot.slane %v720, 2
        %v722 = vadd.f32 %v720, %v721
        %v723 = vrot.slane %v722, 1
        %v724 = vadd.f32 %v722, %v723
        %v725 = vsel %vm706, %v717, 0.0
        %v726 = vrot.slane %v725, 4
        %v727 = vadd.f32 %v725, %v726
        %v728 = vrot.slane %v727, 2
        %v729 = vadd.f32 %v727, %v728
        %v730 = vrot.slane %v729, 1
        %v731 = vadd.f32 %v729, %v730
        %v732 = vmul.f32 %v724, 0.125
        %v733 = vmul.f32 %v731, 0.125
        %v734 = vmul.f32 %v714, %v714
        %v735 = vmul.f32 %v715, %v715
        %v736 = vsub.f32 %v732, %v734
        %v737 = vsub.f32 %v733, %v735
        %v738 = vsub.f32 %v696, %v714
        %v739 = vsub.f32 %v697, %v715
        %v740 = vadd.f32 %v736, 1e-05
        %v741 = vadd.f32 %v737, 1e-05
        %v742 = vrsqrt.pop %v740
        %v743 = vmul.f32 %v742, %v740
        %v744 = vmul.f32 %v743, %v742
        %v745 = vmul.f32 0.5, %v744
        %v746 = vsub.f32 1.5, %v745
        %v747 = vmul.f32 %v742, %v746
        %vm748 = vweird.f32 %v740
        %vm749 = vweird.f32 %v742
        %vm750 = vmor %vm748, %vm749
        %v751 = vsel %vm750, %v742, %v747
        %v752 = vrsqrt.pop %v741
        %v753 = vmul.f32 %v752, %v741
        %v754 = vmul.f32 %v753, %v752
        %v755 = vmul.f32 0.5, %v754
        %v756 = vsub.f32 1.5, %v755
        %v757 = vmul.f32 %v752, %v756
        %vm758 = vweird.f32 %v741
        %vm759 = vweird.f32 %v752
        %vm760 = vmor %vm758, %vm759
        %v761 = vsel %vm760, %v752, %v757
        %v762 = vmul.f32 %v738, %v751
        %v763 = vmul.f32 %v739, %v761
        %764 = vset.pattern.permute.xlu0 4
        %765 = vperm.xlu0 %764, %v649
        %v766 = vpop.permute.xlu0 %765
        %v768 = vmul.f32 %v762, %v766
        %v769 = vmul.f32 %v763, %v766
        %770 = vset.pattern.permute.xlu0 5
        %771 = vperm.xlu0 %770, %v649
        %v772 = vpop.permute.xlu0 %771
        %v774 = vadd.f32 %v768, %v772
        %v775 = vadd.f32 %v769, %v772
        %v776 = vmul.f32 %v774, 0.5
        %v777 = vmul.f32 %v775, 0.5
        %v778 = vmul.f32 %v774, 0.044715
        %v779 = vmul.f32 %v775, 0.044715
        %v780 = vmul.f32 %v778, %v774
        %v781 = vmul.f32 %v779, %v775
        %v782 = vmul.f32 %v780, %v774
        %v783 = vmul.f32 %v781, %v775
        %v784 = vadd.f32 %v774, %v782
        %v785 = vadd.f32 %v775, %v783
        %v786 = vmul.f32 %v784, 0.7978846
        %v787 = vmul.f32 %v785, 0.7978846
        %v788 = vtanh.pop %v786
        %v789 = vtanh.pop %v787
        %v790 = vadd.f32 %v788, 1.0
        %v791 = vadd.f32 %v789, 1.0
        %v792 = vmul.f32 %v776, %v790
        %v793 = vmul.f32 %v777, %v791
        %s794 = scalar_lea.vmem [#allocation8], 8
        %v795 = vld [vmem:[%s794] sm:$0xff]
        %796 = vset.pattern.permute.xlu0 6
        %797 = vperm.xlu0 %796, %v649
        %v798 = vpop.permute.xlu0 %797
        %802 = vrot.lane.b32.xlu0 %v792, 3
        %v803 = vpop.permute.xlu0 %802
        %804 = vrot.lane.b32.xlu0 %v793, 3
        %v805 = vpop.permute.xlu0 %804
        %vm806 = vcmask 23552
        %v807 = vsel %vm806, %v803, %v805
        %v810 = vsel %vm387, %v795, 0
        %812 = vmatpush.msra.mxu0 0.0
        %813 = vmatpush.msra.mxu0 0.0
        %814 = vmatpush.msra.mxu0 0.0
        %815 = vmatpush.msra.mxu0 0.0
        %816 = vmatpush.msra.mxu0 0.0
        %817 = vmatpush.msra.mxu0 0.0
        %818 = vmatpush.msra.mxu0 0.0
        %819 = vmatpush.msra.mxu0 0.0
        %820 = vmatpush.msra.mxu0 0.0
        %821 = vmatpush.msra.mxu0 0.0
        %822 = vmatpush.msra.mxu0 0.0
        %823 = vmatpush.msra.mxu0 0.0
        %824 = vmatpush.msra.mxu0 0.0
        %825 = vmatpush.msra.mxu0 0.0
        %826 = vmatpush.msra.mxu0 0.0
        %827 = vmatpush.msra.mxu0 %v807
        %828 = vmatmul.f32.gmra.mxu0 %v810
        %v829 = vpop.f32.mrf.mxu0
        %v830 = vadd.f32 %v798, %v829
        %831 = vdwg.mxu0
        %v832 = vrot.slane %v830, 4
        %v833 = vadd.f32 %v830, %v832
        %v834 = vrot.slane %v833, 2
        %v835 = vadd.f32 %v833, %v834
        %v836 = vrot.slane %v835, 1
        %v837 = vadd.f32 %v835, %v836
        %v838 = vmul.f32 %v837, 0.125
        %v839 = vmul.f32 %v830, %v830
        %v840 = vrot.slane %v839, 4
        %v841 = vadd.f32 %v839, %v840
        %v842 = vrot.slane %v841, 2
        %v843 = vadd.f32 %v841, %v842
        %v844 = vrot.slane %v843, 1
        %v845 = vadd.f32 %v843, %v844
        %v846 = vmul.f32 %v845, 0.125
        %v847 = vmul.f32 %v838, %v838
        %v848 = vsub.f32 %v846, %v847
        %v849 = vsub.f32 %v830, %v838
        %v850 = vadd.f32 %v848, 1e-05
        %v851 = vrsqrt.pop %v850
        %v852 = vmul.f32 %v851, %v850
        %v853 = vmul.f32 %v852, %v851
        %v854 = vmul.f32 0.5, %v853
        %v855 = vsub.f32 1.5, %v854
        %v856 = vmul.f32 %v851, %v855
        %vm857 = vweird.f32 %v850
        %vm858 = vweird.f32 %v851
        %vm859 = vmor %vm857, %vm858
        %v860 = vsel %vm859, %v851, %v856
        %v861 = vmul.f32 %v849, %v860
        %862 = vset.pattern.permute.xlu0 7
        %863 = vperm.xlu0 %862, %v649
        %v864 = vpop.permute.xlu0 %863
        %v866 = vmul.f32 %v861, %v864
        %867 = vset.pattern.permute.xlu0 8
        %868 = vperm.xlu0 %867, %v649
        %v869 = vpop.permute.xlu0 %868
        %v871 = vadd.f32 %v866, %v869
        %v872 = vmul.f32 %v871, 0.5
        %v873 = vmul.f32 %v871, 0.044715
        %v874 = vmul.f32 %v873, %v871
        %v875 = vmul.f32 %v874, %v871
        %v876 = vadd.f32 %v871, %v875
        %v877 = vmul.f32 %v876, 0.7978846
        %v878 = vtanh.pop %v877
        %v879 = vadd.f32 %v878, 1.0
        %v880 = vmul.f32 %v872, %v879
        %v881 = vadd.f32 %v647, %v880
        %s882 = scalar_lea.vmem [#allocation6], 16
        %v883 = vld [vmem:[%s882] sm:$0xff]
        %v884 = vmul.f32 %v881, %v415
        %885 = vst [vmem:[#allocation2 + $0x8] sm:$0xff] %v884
        %v886 = vld [vmem:[#allocation2] sm:$0xff]
        %v887 = vld [vmem:[#allocation2 + $0x8] sm:$0xff]
        %v888 = vld [vmem:[#allocation2 + $0x10] sm:$0xff]
        %890 = vset.pattern.permute.xlu0 3
        %891 = vperm.xlu0 %890, %v883
        %v892 = vpop.permute.xlu0 %891
        %v894 = vadd.f32 %v892, 0.0
        %895 = vset.pattern.permute.xlu0 0
        %896 = vperm.xlu0 %895, %v883
        %v897 = vpop.permute.xlu0 %896
        %v899 = vmul.f32 %v897, %v886
        %v900 = vmul.f32 %v897, %v887
        %v901 = vadd.f32 %v894, %v899
        %v902 = vadd.f32 %v894, %v900
        %903 = vset.pattern.permute.xlu0 1
        %904 = vperm.xlu0 %903, %v883
        %v905 = vpop.permute.xlu0 %904
        %v907 = vmul.f32 %v905, %v887
        %909 = vrot.lane.b32.xlu0 %v907, 119
        %v910 = vpop.permute.xlu0 %909
        %v912 = vadd.f32 %v901, %v910
        %v913 = vadd.f32 %v902, %v910
        %914 = vset.pattern.permute.xlu0 2
        %915 = vperm.xlu0 %914, %v883
        %v916 = vpop.permute.xlu0 %915
        %v918 = vmul.f32 %v916, %v887
        %v919 = vmul.f32 %v916, %v888
        %922 = vrot.lane.b32.xlu0 %v918, 110
        %v923 = vpop.permute.xlu0 %922
        %924 = vrot.lane.b32.xlu0 %v919, 110
        %v925 = vpop.permute.xlu0 %924
        %vm926 = vcmask 900096
        %v927 = vsel %vm926, %v923, %v925
        %v930 = vadd.f32 %v912, %v923
        %v931 = vadd.f32 %v913, %v927
        %vm932 = vcmask 1048504
        %v933 = vsel %vm932, %v930, 0.0
        %v934 = vrot.slane %v933, 4
        %v935 = vadd.f32 %v933, %v934
        %v936 = vrot.slane %v935, 2
        %v937 = vadd.f32 %v935, %v936
        %v938 = vrot.slane %v937, 1
        %v939 = vadd.f32 %v937, %v938
        %vm940 = vcmask 973824
        %v941 = vsel %vm940, %v931, 0.0
        %v942 = vrot.slane %v941, 4
        %v943 = vadd.f32 %v941, %v942
        %v944 = vrot.slane %v943, 2
        %v945 = vadd.f32 %v943, %v944
        %v946 = vrot.slane %v945, 1
        %v947 = vadd.f32 %v945, %v946
        %v948 = vmul.f32 %v939, 0.125
        %v949 = vmul.f32 %v947, 0.125
        %v950 = vmul.f32 %v930, %v930
        %v951 = vmul.f32 %v931, %v931
        %v952 = vsel %vm932, %v950, 0.0
        %v953 = vrot.slane %v952, 4
        %v954 = vadd.f32 %v952, %v953
        %v955 = vrot.slane %v954, 2
        %v956 = vadd.f32 %v954, %v955
        %v957 = vrot.slane %v956, 1
        %v958 = vadd.f32 %v956, %v957
        %v959 = vsel %vm940, %v951, 0.0
        %v960 = vrot.slane %v959, 4
        %v961 = vadd.f32 %v959, %v960
        %v962 = vrot.slane %v961, 2
        %v963 = vadd.f32 %v961, %v962
        %v964 = vrot.slane %v963, 1
        %v965 = vadd.f32 %v963, %v964
        %v966 = vmul.f32 %v958, 0.125
        %v967 = vmul.f32 %v965, 0.125
        %v968 = vmul.f32 %v948, %v948
        %v969 = vmul.f32 %v949, %v949
        %v970 = vsub.f32 %v966, %v968
        %v971 = vsub.f32 %v967, %v969
        %v972 = vsub.f32 %v930, %v948
        %v973 = vsub.f32 %v931, %v949
        %v974 = vadd.f32 %v970, 1e-05
        %v975 = vadd.f32 %v971, 1e-05
        %v976 = vrsqrt.pop %v974
        %v977 = vmul.f32 %v976, %v974
        %v978 = vmul.f32 %v977, %v976
        %v979 = vmul.f32 0.5, %v978
        %v980 = vsub.f32 1.5, %v979
        %v981 = vmul.f32 %v976, %v980
        %vm982 = vweird.f32 %v974
        %vm983 = vweird.f32 %v976
        %vm984 = vmor %vm982, %vm983
        %v985 = vsel %vm984, %v976, %v981
        %v986 = vrsqrt.pop %v975
        %v987 = vmul.f32 %v986, %v975
        %v988 = vmul.f32 %v987, %v986
        %v989 = vmul.f32 0.5, %v988
        %v990 = vsub.f32 1.5, %v989
        %v991 = vmul.f32 %v986, %v990
        %vm992 = vweird.f32 %v975
        %vm993 = vweird.f32 %v986
        %vm994 = vmor %vm992, %vm993
        %v995 = vsel %vm994, %v986, %v991
        %v996 = vmul.f32 %v972, %v985
        %v997 = vmul.f32 %v973, %v995
        %998 = vset.pattern.permute.xlu0 4
        %999 = vperm.xlu0 %998, %v883
        %v1000 = vpop.permute.xlu0 %999
        %v1002 = vmul.f32 %v996, %v1000
        %v1003 = vmul.f32 %v997, %v1000
        %1004 = vset.pattern.permute.xlu0 5
        %1005 = vperm.xlu0 %1004, %v883
        %v1006 = vpop.permute.xlu0 %1005
        %v1008 = vadd.f32 %v1002, %v1006
        %v1009 = vadd.f32 %v1003, %v1006
        %v1010 = vmul.f32 %v1008, 0.5
        %v1011 = vmul.f32 %v1009, 0.5
        %v1012 = vmul.f32 %v1008, 0.044715
        %v1013 = vmul.f32 %v1009, 0.044715
        %v1014 = vmul.f32 %v1012, %v1008
        %v1015 = vmul.f32 %v1013, %v1009
        %v1016 = vmul.f32 %v1014, %v1008
        %v1017 = vmul.f32 %v1015, %v1009
        %v1018 = vadd.f32 %v1008, %v1016
        %v1019 = vadd.f32 %v1009, %v1017
        %v1020 = vmul.f32 %v1018, 0.7978846
        %v1021 = vmul.f32 %v1019, 0.7978846
        %v1022 = vtanh.pop %v1020
        %v1023 = vtanh.pop %v1021
        %v1024 = vadd.f32 %v1022, 1.0
        %v1025 = vadd.f32 %v1023, 1.0
        %v1026 = vmul.f32 %v1010, %v1024
        %v1027 = vmul.f32 %v1011, %v1025
        %s1028 = scalar_lea.vmem [#allocation8], 16
        %v1029 = vld [vmem:[%s1028] sm:$0xff]
        %1030 = vset.pattern.permute.xlu0 6
        %1031 = vperm.xlu0 %1030, %v883
        %v1032 = vpop.permute.xlu0 %1031
        %1036 = vrot.lane.b32.xlu0 %v1026, 9
        %v1037 = vpop.permute.xlu0 %1036
        %1038 = vrot.lane.b32.xlu0 %v1027, 9
        %v1039 = vpop.permute.xlu0 %1038
        %vm1040 = vcmask 72704
        %v1041 = vsel %vm1040, %v1037, %v1039
        %v1044 = vsel %vm387, %v1029, 0
        %1046 = vmatpush.msra.mxu0 0.0
        %1047 = vmatpush.msra.mxu0 0.0
        %1048 = vmatpush.msra.mxu0 0.0
        %1049 = vmatpush.msra.mxu0 0.0
        %1050 = vmatpush.msra.mxu0 0.0
        %1051 = vmatpush.msra.mxu0 0.0
        %1052 = vmatpush.msra.mxu0 0.0
        %1053 = vmatpush.msra.mxu0 0.0
        %1054 = vmatpush.msra.mxu0 0.0
        %1055 = vmatpush.msra.mxu0 0.0
        %1056 = vmatpush.msra.mxu0 0.0
        %1057 = vmatpush.msra.mxu0 0.0
        %1058 = vmatpush.msra.mxu0 0.0
        %1059 = vmatpush.msra.mxu0 0.0
        %1060 = vmatpush.msra.mxu0 0.0
        %1061 = vmatpush.msra.mxu0 %v1041
        %1062 = vmatmul.f32.gmra.mxu0 %v1044
        %v1063 = vpop.f32.mrf.mxu0
        %v1064 = vadd.f32 %v1032, %v1063
        %1065 = vdwg.mxu0
        %v1066 = vrot.slane %v1064, 4
        %v1067 = vadd.f32 %v1064, %v1066
        %v1068 = vrot.slane %v1067, 2
        %v1069 = vadd.f32 %v1067, %v1068
        %v1070 = vrot.slane %v1069, 1
        %v1071 = vadd.f32 %v1069, %v1070
        %v1072 = vmul.f32 %v1071, 0.125
        %v1073 = vmul.f32 %v1064, %v1064
        %v1074 = vrot.slane %v1073, 4
        %v1075 = vadd.f32 %v1073, %v1074
        %v1076 = vrot.slane %v1075, 2
        %v1077 = vadd.f32 %v1075, %v1076
        %v1078 = vrot.slane %v1077, 1
        %v1079 = vadd.f32 %v1077, %v1078
        %v1080 = vmul.f32 %v1079, 0.125
        %v1081 = vmul.f32 %v1072, %v1072
        %v1082 = vsub.f32 %v1080, %v1081
        %v1083 = vsub.f32 %v1064, %v1072
        %v1084 = vadd.f32 %v1082, 1e-05
        %v1085 = vrsqrt.pop %v1084
        %v1086 = vmul.f32 %v1085, %v1084
        %v1087 = vmul.f32 %v1086, %v1085
        %v1088 = vmul.f32 0.5, %v1087
        %v1089 = vsub.f32 1.5, %v1088
        %v1090 = vmul.f32 %v1085, %v1089
        %vm1091 = vweird.f32 %v1084
        %vm1092 = vweird.f32 %v1085
        %vm1093 = vmor %vm1091, %vm1092
        %v1094 = vsel %vm1093, %v1085, %v1090
        %v1095 = vmul.f32 %v1083, %v1094
        %1096 = vset.pattern.permute.xlu0 7
        %1097 = vperm.xlu0 %1096, %v883
        %v1098 = vpop.permute.xlu0 %1097
        %v1100 = vmul.f32 %v1095, %v1098
        %1101 = vset.pattern.permute.xlu0 8
        %1102 = vperm.xlu0 %1101, %v883
        %v1103 = vpop.permute.xlu0 %1102
        %v1105 = vadd.f32 %v1100, %v1103
        %v1106 = vmul.f32 %v1105, 0.5
        %v1107 = vmul.f32 %v1105, 0.044715
        %v1108 = vmul.f32 %v1107, %v1105
        %v1109 = vmul.f32 %v1108, %v1105
        %v1110 = vadd.f32 %v1105, %v1109
        %v1111 = vmul.f32 %v1110, 0.7978846
        %v1112 = vtanh.pop %v1111
        %v1113 = vadd.f32 %v1112, 1.0
        %v1114 = vmul.f32 %v1106, %v1113
        %v1115 = vadd.f32 %v881, %v1114
        %v1116 = vmul.f32 %v1115, %v415
        %v1117 = vld [vmem:[#allocation9] sm:$0xff]
        %v1118 = vld [vmem:[%s7] sm:$0xff]
        %1120 = vset.pattern.permute.xlu0 0
        %1121 = vperm.xlu0 %1120, %v1118
        %v1122 = vpop.permute.xlu0 %1121
        %v1125 = vsel %vm387, %v1117, 0
        %1127 = vmatpush.msra.mxu0 0.0
        %1128 = vmatpush.msra.mxu0 0.0
        %1129 = vmatpush.msra.mxu0 0.0
        %1130 = vmatpush.msra.mxu0 0.0
        %1131 = vmatpush.msra.mxu0 0.0
        %1132 = vmatpush.msra.mxu0 0.0
        %1133 = vmatpush.msra.mxu0 0.0
        %1134 = vmatpush.msra.mxu0 0.0
        %1135 = vmatpush.msra.mxu0 0.0
        %1136 = vmatpush.msra.mxu0 0.0
        %1137 = vmatpush.msra.mxu0 0.0
        %1138 = vmatpush.msra.mxu0 0.0
        %1139 = vmatpush.msra.mxu0 0.0
        %1140 = vmatpush.msra.mxu0 0.0
        %1141 = vmatpush.msra.mxu0 0.0
        %1142 = vmatpush.msra.mxu0 %v1116
        %1143 = vmatmul.f32.gmra.mxu0 %v1125
        %v1144 = vpop.f32.mrf.mxu0
        %v1145 = vadd.f32 %v1122, %v1144
        %1146 = vdwg.mxu0
        %v1147 = vmul.f32 %v1145, %v415
        %1148 = vst [vmem:[%s370] sm:$0xff] %v1147
        %s1149 = sand.u32 %s211, 1
        %s1150 = scalar_lea.sflag [#allocation5], %s1149
        %s1151 = sand.u32 %s211, 1
        %s1152 = smul.addr %s1151, 8
        %s1153 = scalar_lea.vmem [#allocation11], %s1152
        // Predicated region
        $region69: #{tpu_custom_call.1} parent=51 // pred_check
          %p1154 = pneg %p221
        $region70: #{tpu_custom_call.1} parent=51 // pred_check_branch
          %1156 = sbr.rel (%p1154) target = $region72
        $region71: #{tpu_custom_call.1} parent=51 // pred_region
          %1158 = vsyncadd %s1150, 0
          %s1159 = smul.addr %s25, 8
          %s1160 = scalar_lea.hbm %s8, %s1159
          %s1162 = sshll.u32 %s1153, 4
          %s1163 = int_to_ptr.vmem [resolvable:$true] %s1162
          %s1164 = sshll.u32 %s1160, 4
          %s1165 = int_to_ptr.hbm [resolvable:$true] %s1164
          %1167 = dma.vmem_to_hbm [thread:$0]  %s1163, 128, %s1165, %s1150
        $region72: #{tpu_custom_call.1} parent=51 // pred_fallthru
          _
      $region52: #{tpu_custom_call.1} parent=5 // pred_fallthru
        _
      %p1168 = scmp.le.s32.totalorder 2, %s20
      // Predicated region
      $region73: #{tpu_custom_call.1} parent=5 // pred_check
        %p1169 = pneg %p1168
      $region74: #{tpu_custom_call.1} parent=5 // pred_check_branch
        %1171 = sbr.rel (%p1169) target = $region76
      $region75: #{tpu_custom_call.1} parent=5 // pred_region
        %s1172 = ssub.s32 %s20, 2
        // Predicated region
        $region77: #{tpu_custom_call.1} parent=75 // pred_check
          %p1173 = pneg %p227
        $region78: #{tpu_custom_call.1} parent=75 // pred_check_branch
          %1175 = sbr.rel (%p1173) target = $region80
        $region79: #{tpu_custom_call.1} parent=75 // pred_region
          %s1176 = sand.u32 %s212, 1
          %s1177 = scalar_lea.sflag [#allocation5], %s1176
          %s1178 = sand.u32 %s212, 1
          %s1179 = smul.addr %s1178, 8
          %s1180 = scalar_lea.vmem [#allocation11], %s1179
          %1182 = dma.done %s1177, 128
        $region80: #{tpu_custom_call.1} parent=75 // pred_fallthru
          _
      $region76: #{tpu_custom_call.1} parent=5 // pred_fallthru
        _
    $region6: #{tpu_custom_call.1} parent=1 // loop_footer
      %s24 = sadd.s32 1, %s20
    $region7: #{tpu_custom_call.1} parent=1 // loop_footer_branch
      %19 = sbr.rel target = $region3
    $region8: #{tpu_custom_call.1} parent=1 // loop_exit
      _
    %1183 = vsyncpa [#allocation4], 1
    %s1184 = scalar_lea.sflag [#allocation4], 1
    %1185 = vsyncpa %s1184, 1
    %1186 = vsyncpa [#allocation7], 1
    %1187 = vsyncpa [#allocation10], 1
    %1188 = vsyncpa [#allocation5], 1
    %s1189 = scalar_lea.sflag [#allocation5], 1
    %1190 = vsyncpa %s1189, 1

</llo_original>
